<compile_context>
chip_gen: v7x
topology: tpu7x:2x2x1
jax: 0.10.0
libtpu: 0.0.40
codegen_flags: <defaults>
</compile_context>

<pallas_src>
import jax
import jax.numpy as jnp
from jax.experimental import pallas as pl
from jax.experimental.pallas import tpu as pltpu


def _round_up(x, m):
    return ((x + m - 1) // m) * m


def _block_diag(blocks):
    """Host-side block-diagonal assembly (small matrices, done once)."""
    rows = sum(b.shape[0] for b in blocks)
    cols = sum(b.shape[1] for b in blocks)
    out = jnp.zeros((rows, cols), blocks[0].dtype)
    r = c = 0
    for b in blocks:
        out = out.at[r:r + b.shape[0], c:c + b.shape[1]].set(b)
        r += b.shape[0]
        c += b.shape[1]
    return out


def discriminator_kernel(xc_ref,
                         w1_ref, b1_ref,   # fused enc0 / cond0
                         w2_ref, b2_ref,   # enc1 (+ identity pass-through for the cond half)
                         w3_ref, b3_ref,   # folded (enc2 -> dec0a, cond1 -> dec0b), stacked
                         w4_ref, b4_ref,   # dec1
                         w5_ref, b5_ref,   # dec2 (output layer, lane-dense)
                         out_ref):
    relu = lambda v: jnp.maximum(v, 0.0)

    def dot(a, w_ref):
        # bf16 x bf16 on the MXU, f32 accumulation.
        return jnp.dot(a.astype(jnp.bfloat16), w_ref[...],
                       preferred_element_type=jnp.float32)

    a = xc_ref[...]                                   # (tile_r, pack*(d_in+d_c)) bf16
    a = relu(dot(a, w1_ref) + b1_ref[...])            # [h0 | g0]   per packed sub-row
    a = relu(dot(a, w2_ref) + b2_ref[...])            # [h1 | g0]   (relu(g0) == g0)
    a = relu(dot(a, w3_ref) + b3_ref[...])            # d0 = relu(cat @ wd0 + bd0), folded
    a = relu(dot(a, w4_ref) + b4_ref[...])            # d1
    out_ref[...] = dot(a, w5_ref) + b5_ref[...]       # (tile_r, pack*d_in) f32, lane-dense


def discriminator_forward(x, condition, kparams, *, pack=8, tile_r_cap=512):
    """x: (B, input_dim) f32, condition: (B, param_dim) f32.

    tile_r_cap: max packed-row tile (512 packed rows = 4096 original batch rows);
    keeps double-buffered tiles + resident weights + intermediates ~6-8 MiB, under
    every generation's scoped-VMEM default.
    """
    B, d_in = x.shape
    _, d_c = condition.shape
    f_in = d_in + d_c
    out_w = kparams[8].shape[1]                       # = pack * d_in

    # Host-side layout plumbing: fuse the two input streams, cast to bf16, lane-pack rows.
    xc = jnp.concatenate([x, condition], axis=-1).astype(jnp.bfloat16)   # (B, f_in)

    b_pack = -(-B // pack)                            # packed rows needed
    tile_r = min(tile_r_cap, _round_up(b_pack, 16))   # >= 16, multiple of 16 (bf16 sublanes)
    # Keep >= 2 grid steps when the batch allows it (v7x shards the parallel axis over 2 TCs).
    if b_pack >= 32 and _round_up(b_pack, tile_r) // tile_r < 2:
        tile_r = _round_up(-(-b_pack // 2), 16)
    b_pack_pad = _round_up(b_pack, tile_r)
    rows_pad = b_pack_pad * pack
    if rows_pad != B:
        xc = jnp.pad(xc, ((0, rows_pad - B), (0, 0)))
    xc = xc.reshape(b_pack_pad, pack * f_in)
    grid = (b_pack_pad // tile_r,)

    in_specs = [pl.BlockSpec((tile_r, pack * f_in), lambda i: (i, 0))]
    # Weights / biases: full-array blocks with a constant index_map -> VMEM-resident
    # across the batch grid (no re-fetch per tile).
    in_specs += [pl.BlockSpec(p.shape, lambda i: (0, 0)) for p in kparams]
    out_specs = pl.BlockSpec((tile_r, out_w), lambda i: (i, 0))

    w_shapes = [kparams[i].shape for i in (0, 2, 4, 6, 8)]
    flops = 2 * b_pack_pad * sum(k * n for k, n in w_shapes)
    bytes_accessed = (xc.size * xc.dtype.itemsize
                      + sum(int(p.size) * p.dtype.itemsize for p in kparams)
                      + b_pack_pad * out_w * 4)

    out = pl.pallas_call(
        discriminator_kernel,
        out_shape=jax.ShapeDtypeStruct((b_pack_pad, out_w), jnp.float32),
        grid=grid,
        in_specs=in_specs,
        out_specs=out_specs,
        compiler_params=pltpu.CompilerParams(dimension_semantics=("parallel",)),
        cost_estimate=pl.CostEstimate(flops=flops, transcendentals=0,
                                      bytes_accessed=bytes_accessed),
    )(xc, *kparams)

    # Unpack lanes back to rows and drop the batch padding.
    return out.reshape(rows_pad, d_in)[:B]


def init_params(key, input_dim, param_dim, hidden_dim):
    """Deterministic PyTorch-style init. Weights (in, out); biases (1, out); all f32."""
    def lin(k, fan_in, fan_out):
        kw, kb = jax.random.split(k)
        lim = 1.0 / jnp.sqrt(fan_in)
        w = jax.random.uniform(kw, (fan_in, fan_out), jnp.float32, -lim, lim)
        b = jax.random.uniform(kb, (1, fan_out), jnp.float32, -lim, lim)
        return w, b

    keys = jax.random.split(key, 8)
    return {
        "enc0": lin(keys[0], input_dim, hidden_dim),
        "enc1": lin(keys[1], hidden_dim, hidden_dim),
        "enc2": lin(keys[2], hidden_dim, hidden_dim),
        "cond0": lin(keys[3], param_dim, hidden_dim),
        "cond1": lin(keys[4], hidden_dim, hidden_dim),
        "dec0": lin(keys[5], 2 * hidden_dim, hidden_dim),
        "dec1": lin(keys[6], hidden_dim, hidden_dim),
        "dec2": lin(keys[7], hidden_dim, input_dim),
    }


def prepare_kernel_params(params, hidden_dim, *, pack=8, weight_dtype=jnp.bfloat16):
    """Host-side, one-time: fuse/fold the network into 5 stages, build pack-way
    block-diagonal weights and tiled biases, cast weights to bf16 (biases stay f32)."""
    we0, be0 = params["enc0"]
    we1, be1 = params["enc1"]
    we2, be2 = params["enc2"]
    wc0, bc0 = params["cond0"]
    wc1, bc1 = params["cond1"]
    wd0, bd0 = params["dec0"]
    wd1, bd1 = params["dec1"]
    wd2, bd2 = params["dec2"]
    H = hidden_dim

    # Stage 1: fused first linears of encoding and condition branches.
    w1 = _block_diag([we0, wc0])                              # (d_in + d_c, 2H)
    b1 = jnp.concatenate([be0, bc0], axis=-1)
    # Stage 2: enc layer-1 on the h half, identity pass-through on the g half
    # (ReLU is a no-op on g, which is already a ReLU output).
    w2 = _block_diag([we1, jnp.eye(H, dtype=we1.dtype)])      # (2H, 2H)
    b2 = jnp.concatenate([be1, jnp.zeros_like(bc0)], axis=-1)
    # Stage 3: fold (enc2 -> dec0a) and (cond1 -> dec0b) into one stacked K=2H matmul.
    # Composed in f32; cast once to bf16 below.
    # TODO(synk): on trained weights re-validate the bf16-cast fold; if accuracy is tight,
    # keep this stage in f32 or split back into blockdiag(we2, wc1) followed by wd0.
    wd0a, wd0b = wd0[:H], wd0[H:]
    w3 = jnp.concatenate([we2 @ wd0a, wc1 @ wd0b], axis=0)    # (2H, H)
    b3 = be2 @ wd0a + bc1 @ wd0b + bd0
    # Stages 4/5: decoding tail.
    w4, b4 = wd1, bd1
    w5, b5 = wd2, bd2                                         # (H, d_in)

    def bd(w):
        return _block_diag([w] * pack).astype(weight_dtype)

    def tile(b):
        return jnp.tile(b, (1, pack))                         # f32 biases, add into f32 acc

    return (bd(w1), tile(b1), bd(w2), tile(b2), bd(w3), tile(b3),
            bd(w4), tile(b4), bd(w5), tile(b5))


def reference_forward(x, condition, params):
    """Original module semantics (eval mode), f32 throughout."""
    relu = lambda v: jnp.maximum(v, 0.0)
    we0, be0 = params["enc0"]
    we1, be1 = params["enc1"]
    we2, be2 = params["enc2"]
    wc0, bc0 = params["cond0"]
    wc1, bc1 = params["cond1"]
    wd0, bd0 = params["dec0"]
    wd1, bd1 = params["dec1"]
    wd2, bd2 = params["dec2"]

    h = relu(x @ we0 + be0)
    h = relu(h @ we1 + be1)
    enc = h @ we2 + be2
    g = relu(condition @ wc0 + bc0)
    cond = g @ wc1 + bc1
    cat = jnp.concatenate([enc, cond], axis=-1)
    d = relu(cat @ wd0 + bd0)
    d = relu(d @ wd1 + bd1)
    return d @ wd2 + bd2


if __name__ == "__main__":
    batch = 256          # small demo batch; exercises packing, padding and a 2-step grid
    input_dim = 16       # input_dimension
    param_dim = 8        # parameter_dimension
    hidden_dim = 32      # hidden_dimension
    pack = 8             # 8 rows per packed lane-row -> output is exactly 128 lanes

    key = jax.random.PRNGKey(0)
    kx, kc, kp = jax.random.split(key, 3)
    x = jax.random.normal(kx, (batch, input_dim), jnp.float32)
    condition = jax.random.normal(kc, (batch, param_dim), jnp.float32)

    params = init_params(kp, input_dim, param_dim, hidden_dim)
    kparams = prepare_kernel_params(params, hidden_dim, pack=pack)

    out = discriminator_forward(x, condition, kparams, pack=pack)
    out = jax.block_until_ready(out)

    ref = reference_forward(x, condition, params)
    assert out.shape == (batch, input_dim)
    # bf16 weights / bf16 MXU operands vs f32 reference -> ~1e-2-class tolerance
    max_err = float(jnp.max(jnp.abs(out - ref)))
    assert jnp.allclose(out, ref, atol=3e-2, rtol=3e-2), f"mismatch vs reference (max abs err {max_err})"

    # TODO(synk): Dropout(p=0.3) is treated as identity (eval-mode semantics);
    # training-mode stochastic dropout would use pltpu.prng_seed/prng_random_bits
    # and must also undo the enc2/cond1 -> dec0 algebraic fold.
    print("KERNEL_OK")
</pallas_src>

<mosaic_0001>
module attributes {stable_mosaic.version = 11 : i64} {
  func.func @discriminator_kernel(%arg0: i32, %arg1: memref<16x192xbf16, #tpu.memory_space<vmem>>, %arg2: memref<192x512xbf16, #tpu.memory_space<vmem>>, %arg3: memref<1x512xf32, #tpu.memory_space<vmem>>, %arg4: memref<512x512xbf16, #tpu.memory_space<vmem>>, %arg5: memref<1x512xf32, #tpu.memory_space<vmem>>, %arg6: memref<512x256xbf16, #tpu.memory_space<vmem>>, %arg7: memref<1x256xf32, #tpu.memory_space<vmem>>, %arg8: memref<256x256xbf16, #tpu.memory_space<vmem>>, %arg9: memref<1x256xf32, #tpu.memory_space<vmem>>, %arg10: memref<256x128xbf16, #tpu.memory_space<vmem>>, %arg11: memref<1x128xf32, #tpu.memory_space<vmem>>, %arg12: memref<16x128xf32, #tpu.memory_space<vmem>>) attributes {dimension_semantics = [#tpu.dimension_semantics<parallel>], iteration_bounds = array<i64: 2>, scalar_prefetch = 0 : i64, scratch_operands = 0 : i64, tpu.core_type = #tpu.core_type<tc>, window_params = [{transform_indices = @transform_0, window_bounds = array<i64: 16, 192>}, {pipeline_mode = #tpu.pipeline_mode<synchronous>, transform_indices = @transform_1, window_bounds = array<i64: 192, 512>}, {pipeline_mode = #tpu.pipeline_mode<synchronous>, transform_indices = @transform_2, window_bounds = array<i64: 1, 512>}, {pipeline_mode = #tpu.pipeline_mode<synchronous>, transform_indices = @transform_3, window_bounds = array<i64: 512, 512>}, {pipeline_mode = #tpu.pipeline_mode<synchronous>, transform_indices = @transform_4, window_bounds = array<i64: 1, 512>}, {pipeline_mode = #tpu.pipeline_mode<synchronous>, transform_indices = @transform_5, window_bounds = array<i64: 512, 256>}, {pipeline_mode = #tpu.pipeline_mode<synchronous>, transform_indices = @transform_6, window_bounds = array<i64: 1, 256>}, {pipeline_mode = #tpu.pipeline_mode<synchronous>, transform_indices = @transform_7, window_bounds = array<i64: 256, 256>}, {pipeline_mode = #tpu.pipeline_mode<synchronous>, transform_indices = @transform_8, window_bounds = array<i64: 1, 256>}, {pipeline_mode = #tpu.pipeline_mode<synchronous>, transform_indices = @transform_9, window_bounds = array<i64: 256, 128>}, {pipeline_mode = #tpu.pipeline_mode<synchronous>, transform_indices = @transform_10, window_bounds = array<i64: 1, 128>}, {transform_indices = @transform_11, window_bounds = array<i64: 16, 128>}]} {
    %c0 = arith.constant 0 : index
    %c0_0 = arith.constant 0 : index
    %0 = vector.load %arg1[%c0, %c0_0] : memref<16x192xbf16, #tpu.memory_space<vmem>>, vector<16x192xbf16>
    %c0_1 = arith.constant 0 : index
    %c0_2 = arith.constant 0 : index
    %1 = vector.load %arg2[%c0_1, %c0_2] : memref<192x512xbf16, #tpu.memory_space<vmem>>, vector<192x512xbf16>
    %cst = arith.constant dense<0.000000e+00> : vector<16x512xf32>
    %2 = tpu.matmul %0, %1, %cst {dimension_numbers = #tpu.dot_dimension_numbers<[1], [0], [0], [1], [0, 0, 1, 1], [], []>} : vector<16x192xbf16>, vector<192x512xbf16>, vector<16x512xf32> -> vector<16x512xf32>
    %c0_3 = arith.constant 0 : index
    %c0_4 = arith.constant 0 : index
    %3 = vector.load %arg3[%c0_3, %c0_4] : memref<1x512xf32, #tpu.memory_space<vmem>>, vector<1x512xf32>
    %4 = vector.broadcast %3 : vector<1x512xf32> to vector<16x512xf32>
    %5 = arith.addf %2, %4 : vector<16x512xf32>
    %cst_5 = arith.constant 0.000000e+00 : f32
    %6 = vector.broadcast %cst_5 : f32 to vector<16x512xf32>
    %7 = arith.maximumf %5, %6 : vector<16x512xf32>
    %8 = arith.truncf %7 : vector<16x512xf32> to vector<16x512xbf16>
    %c0_6 = arith.constant 0 : index
    %c0_7 = arith.constant 0 : index
    %9 = vector.load %arg4[%c0_6, %c0_7] : memref<512x512xbf16, #tpu.memory_space<vmem>>, vector<512x512xbf16>
    %cst_8 = arith.constant dense<0.000000e+00> : vector<16x512xf32>
    %10 = tpu.matmul %8, %9, %cst_8 {dimension_numbers = #tpu.dot_dimension_numbers<[1], [0], [0], [1], [0, 0, 1, 1], [], []>} : vector<16x512xbf16>, vector<512x512xbf16>, vector<16x512xf32> -> vector<16x512xf32>
    %c0_9 = arith.constant 0 : index
    %c0_10 = arith.constant 0 : index
    %11 = vector.load %arg5[%c0_9, %c0_10] : memref<1x512xf32, #tpu.memory_space<vmem>>, vector<1x512xf32>
    %12 = vector.broadcast %11 : vector<1x512xf32> to vector<16x512xf32>
    %13 = arith.addf %10, %12 : vector<16x512xf32>
    %cst_11 = arith.constant 0.000000e+00 : f32
    %14 = vector.broadcast %cst_11 : f32 to vector<16x512xf32>
    %15 = arith.maximumf %13, %14 : vector<16x512xf32>
    %16 = arith.truncf %15 : vector<16x512xf32> to vector<16x512xbf16>
    %c0_12 = arith.constant 0 : index
    %c0_13 = arith.constant 0 : index
    %17 = vector.load %arg6[%c0_12, %c0_13] : memref<512x256xbf16, #tpu.memory_space<vmem>>, vector<512x256xbf16>
    %cst_14 = arith.constant dense<0.000000e+00> : vector<16x256xf32>
    %18 = tpu.matmul %16, %17, %cst_14 {dimension_numbers = #tpu.dot_dimension_numbers<[1], [0], [0], [1], [0, 0, 1, 1], [], []>} : vector<16x512xbf16>, vector<512x256xbf16>, vector<16x256xf32> -> vector<16x256xf32>
    %c0_15 = arith.constant 0 : index
    %c0_16 = arith.constant 0 : index
    %19 = vector.load %arg7[%c0_15, %c0_16] : memref<1x256xf32, #tpu.memory_space<vmem>>, vector<1x256xf32>
    %20 = vector.broadcast %19 : vector<1x256xf32> to vector<16x256xf32>
    %21 = arith.addf %18, %20 : vector<16x256xf32>
    %cst_17 = arith.constant 0.000000e+00 : f32
    %22 = vector.broadcast %cst_17 : f32 to vector<16x256xf32>
    %23 = arith.maximumf %21, %22 : vector<16x256xf32>
    %24 = arith.truncf %23 : vector<16x256xf32> to vector<16x256xbf16>
    %c0_18 = arith.constant 0 : index
    %c0_19 = arith.constant 0 : index
    %25 = vector.load %arg8[%c0_18, %c0_19] : memref<256x256xbf16, #tpu.memory_space<vmem>>, vector<256x256xbf16>
    %cst_20 = arith.constant dense<0.000000e+00> : vector<16x256xf32>
    %26 = tpu.matmul %24, %25, %cst_20 {dimension_numbers = #tpu.dot_dimension_numbers<[1], [0], [0], [1], [0, 0, 1, 1], [], []>} : vector<16x256xbf16>, vector<256x256xbf16>, vector<16x256xf32> -> vector<16x256xf32>
    %c0_21 = arith.constant 0 : index
    %c0_22 = arith.constant 0 : index
    %27 = vector.load %arg9[%c0_21, %c0_22] : memref<1x256xf32, #tpu.memory_space<vmem>>, vector<1x256xf32>
    %28 = vector.broadcast %27 : vector<1x256xf32> to vector<16x256xf32>
    %29 = arith.addf %26, %28 : vector<16x256xf32>
    %cst_23 = arith.constant 0.000000e+00 : f32
    %30 = vector.broadcast %cst_23 : f32 to vector<16x256xf32>
    %31 = arith.maximumf %29, %30 : vector<16x256xf32>
    %32 = arith.truncf %31 : vector<16x256xf32> to vector<16x256xbf16>
    %c0_24 = arith.constant 0 : index
    %c0_25 = arith.constant 0 : index
    %33 = vector.load %arg10[%c0_24, %c0_25] : memref<256x128xbf16, #tpu.memory_space<vmem>>, vector<256x128xbf16>
    %cst_26 = arith.constant dense<0.000000e+00> : vector<16x128xf32>
    %34 = tpu.matmul %32, %33, %cst_26 {dimension_numbers = #tpu.dot_dimension_numbers<[1], [0], [0], [1], [0, 0, 1, 1], [], []>} : vector<16x256xbf16>, vector<256x128xbf16>, vector<16x128xf32> -> vector<16x128xf32>
    %c0_27 = arith.constant 0 : index
    %c0_28 = arith.constant 0 : index
    %35 = vector.load %arg11[%c0_27, %c0_28] : memref<1x128xf32, #tpu.memory_space<vmem>>, vector<1x128xf32>
    %36 = vector.broadcast %35 : vector<1x128xf32> to vector<16x128xf32>
    %37 = arith.addf %34, %36 : vector<16x128xf32>
    %c0_29 = arith.constant 0 : index
    %c0_30 = arith.constant 0 : index
    %38 = vector.load %arg12[%c0_29, %c0_30] : memref<16x128xf32, #tpu.memory_space<vmem>>, vector<16x128xf32>
    tpu.vector_store %arg12[%c0_29, %c0_30], %37 {strides = array<i32>} : memref<16x128xf32, #tpu.memory_space<vmem>>, vector<16x128xf32>,
    return
  }
  func.func @transform_0(%arg0: i32) -> (i32, i32) {
    %c0_i32 = arith.constant 0 : i32
    %c0_i32_0 = arith.constant 0 : i32
    return %arg0, %c0_i32 : i32, i32
  }
  func.func @transform_1(%arg0: i32) -> (i32, i32) {
    %c0_i32 = arith.constant 0 : i32
    %c0_i32_0 = arith.constant 0 : i32
    %c0_i32_1 = arith.constant 0 : i32
    return %c0_i32, %c0_i32_0 : i32, i32
  }
  func.func @transform_2(%arg0: i32) -> (i32, i32) {
    %c0_i32 = arith.constant 0 : i32
    %c0_i32_0 = arith.constant 0 : i32
    %c0_i32_1 = arith.constant 0 : i32
    return %c0_i32, %c0_i32_0 : i32, i32
  }
  func.func @transform_3(%arg0: i32) -> (i32, i32) {
    %c0_i32 = arith.constant 0 : i32
    %c0_i32_0 = arith.constant 0 : i32
    %c0_i32_1 = arith.constant 0 : i32
    return %c0_i32, %c0_i32_0 : i32, i32
  }
  func.func @transform_4(%arg0: i32) -> (i32, i32) {
    %c0_i32 = arith.constant 0 : i32
    %c0_i32_0 = arith.constant 0 : i32
    %c0_i32_1 = arith.constant 0 : i32
    return %c0_i32, %c0_i32_0 : i32, i32
  }
  func.func @transform_5(%arg0: i32) -> (i32, i32) {
    %c0_i32 = arith.constant 0 : i32
    %c0_i32_0 = arith.constant 0 : i32
    %c0_i32_1 = arith.constant 0 : i32
    return %c0_i32, %c0_i32_0 : i32, i32
  }
  func.func @transform_6(%arg0: i32) -> (i32, i32) {
    %c0_i32 = arith.constant 0 : i32
    %c0_i32_0 = arith.constant 0 : i32
    %c0_i32_1 = arith.constant 0 : i32
    return %c0_i32, %c0_i32_0 : i32, i32
  }
  func.func @transform_7(%arg0: i32) -> (i32, i32) {
    %c0_i32 = arith.constant 0 : i32
    %c0_i32_0 = arith.constant 0 : i32
    %c0_i32_1 = arith.constant 0 : i32
    return %c0_i32, %c0_i32_0 : i32, i32
  }
  func.func @transform_8(%arg0: i32) -> (i32, i32) {
    %c0_i32 = arith.constant 0 : i32
    %c0_i32_0 = arith.constant 0 : i32
    %c0_i32_1 = arith.constant 0 : i32
    return %c0_i32, %c0_i32_0 : i32, i32
  }
  func.func @transform_9(%arg0: i32) -> (i32, i32) {
    %c0_i32 = arith.constant 0 : i32
    %c0_i32_0 = arith.constant 0 : i32
    %c0_i32_1 = arith.constant 0 : i32
    return %c0_i32, %c0_i32_0 : i32, i32
  }
  func.func @transform_10(%arg0: i32) -> (i32, i32) {
    %c0_i32 = arith.constant 0 : i32
    %c0_i32_0 = arith.constant 0 : i32
    %c0_i32_1 = arith.constant 0 : i32
    return %c0_i32, %c0_i32_0 : i32, i32
  }
  func.func @transform_11(%arg0: i32) -> (i32, i32) {
    %c0_i32 = arith.constant 0 : i32
    %c0_i32_0 = arith.constant 0 : i32
    return %arg0, %c0_i32 : i32, i32
  }
}

</mosaic_0001>

<llo_original>
// kernel: tpu_custom_call.1
$region0: #{tpu_custom_call.1}
  #allocation0 [shape = 'u32[]', space=smem, size = 0x4, offset = 0x4, fixed_abs, tag = 'smem constant byte address 0x4 - core index']
  #allocation1 [shape = 'u32[144,128]{1,0:T(1,128)}', space=vmem, size = 0x12000, scoped, tag = 'internal scratch']
  %s0 = inlined_call_operand.hbm [shape: bf16[32,192], index: 0, kind: input, shape index: {}]
  %s1 = inlined_call_operand.hbm [shape: bf16[192,512], index: 1, kind: input, shape index: {}]
  %s2 = inlined_call_operand.vmem [shape: f32[1,512], index: 2, kind: input, shape index: {}]
  %s3 = inlined_call_operand.hbm [shape: bf16[512,512], index: 3, kind: input, shape index: {}]
  %s4 = inlined_call_operand.vmem [shape: f32[1,512], index: 4, kind: input, shape index: {}]
  %s5 = inlined_call_operand.hbm [shape: bf16[512,256], index: 5, kind: input, shape index: {}]
  %s6 = inlined_call_operand.vmem [shape: f32[1,256], index: 6, kind: input, shape index: {}]
  %s7 = inlined_call_operand.hbm [shape: bf16[256,256], index: 7, kind: input, shape index: {}]
  %s8 = inlined_call_operand.vmem [shape: f32[1,256], index: 8, kind: input, shape index: {}]
  %s9 = inlined_call_operand.hbm [shape: bf16[256,128], index: 9, kind: input, shape index: {}]
  %s10 = inlined_call_operand.vmem [shape: f32[1,128], index: 10, kind: input, shape index: {}]
  %s11 = inlined_call_operand.hbm [shape: f32[32,128], index: 11, kind: output, shape index: {}]
  %s12 = sld [smem:[#allocation0]]
  $region101: #{tpu_custom_call.1} parent=0
    _
  %s14 = ssub.s32 1, %s12
  %s15 = scalar_select 0, %s14, %s12
  $region1: #{tpu_custom_call.1} parent=0
    #allocation2 [shape = 'u8[16384]{0}', space=vmem, size = 0x4000, scoped, tag = 'input window, operand 0']
    #allocation3 [shape = 's32[2]{0}', space=sflag, size = 0x8, scoped, tag = 'scoped memory for tpu_custom_call.1']
    #allocation4 [shape = 's32[2]{0}', space=sflag, size = 0x8, scoped, tag = 'scoped memory for tpu_custom_call.1']
    #allocation5 [shape = 'u8[196608]{0}', space=vmem, size = 0x30000, scoped, tag = 'input window, operand 1, single buffered']
    #allocation6 [shape = 's32[1]{0}', space=sflag, size = 0x4, scoped, tag = 'scoped memory for tpu_custom_call.1']
    #allocation7 [shape = 'u8[524288]{0}', space=vmem, size = 0x80000, scoped, tag = 'input window, operand 3, single buffered']
    #allocation8 [shape = 'u8[262144]{0}', space=vmem, size = 0x40000, scoped, tag = 'input window, operand 5, single buffered']
    #allocation9 [shape = 's32[1]{0}', space=sflag, size = 0x4, scoped, tag = 'scoped memory for tpu_custom_call.1']
    #allocation10 [shape = 'u8[131072]{0}', space=vmem, size = 0x20000, scoped, tag = 'input window, operand 7, single buffered']
    #allocation11 [shape = 'u8[65536]{0}', space=vmem, size = 0x10000, scoped, tag = 'input window, operand 9, single buffered']
    #allocation12 [shape = 's32[1]{0}', space=sflag, size = 0x4, scoped, tag = 'scoped memory for tpu_custom_call.1']
    #allocation13 [shape = 'u8[16384]{0}', space=vmem, size = 0x4000, scoped, tag = 'output window, operand 0']
    %16 = vsyncpa [#allocation3], 0
    %s17 = scalar_lea.sflag [#allocation3], 1
    %18 = vsyncpa %s17, 0
    %19 = vsyncpa [#allocation6], 0
    %20 = vsyncpa [#allocation9], 0
    %21 = vsyncpa [#allocation12], 0
    %22 = vsyncpa [#allocation4], 0
    %s23 = scalar_lea.sflag [#allocation4], 1
    %24 = vsyncpa %s23, 0
    loop: start=0, step=1, limit=4
    $region2: #{tpu_custom_call.1} parent=1 // loop_pre_header
      _
    $region3: #{tpu_custom_call.1} parent=1 // loop_header
      %s26 = sphi 0, %s30
      %p27 = scmp.ge.s32.totalorder %s26, 4
      %s36 = sphi 0, %s38
      %s39 = sphi 0, %s36
      %s40 = sphi 0, %s39
      %s56 = sphi 0, %s40
      %s60 = sphi 0, %s60
      %s62 = sphi 0, %s60
      %s63 = sphi 0, %s62
      %s77 = sphi 0, %s63
      %s81 = sphi 0, %s81
      %s83 = sphi 0, %s81
      %s84 = sphi 0, %s83
      %s98 = sphi 0, %s84
      %s102 = sphi 0, %s102
      %s104 = sphi 0, %s102
      %s105 = sphi 0, %s104
      %s119 = sphi 0, %s105
      %s123 = sphi 0, %s123
      %s125 = sphi 0, %s123
      %s126 = sphi 0, %s125
      %s140 = sphi 0, %s126
      %s144 = sphi 0, %s144
      %s146 = sphi 0, %s144
      %s147 = sphi 0, %s146
      %s161 = sphi 0, %s147
      %s165 = sphi 0, %s165
      %s167 = sphi 0, %s165
      %s168 = sphi 0, %s167
      %s182 = sphi 0, %s168
      %s186 = sphi 0, %s186
      %s188 = sphi 0, %s186
      %s189 = sphi 0, %s188
      %s203 = sphi 0, %s189
      %s207 = sphi 0, %s207
      %s209 = sphi 0, %s207
      %s210 = sphi 0, %s209
      %s224 = sphi 0, %s210
      %s228 = sphi 0, %s228
      %s230 = sphi 0, %s228
      %s231 = sphi 0, %s230
      %s245 = sphi 0, %s231
      %s249 = sphi 0, %s249
      %s251 = sphi 0, %s249
      %s252 = sphi 0, %s251
      %s266 = sphi 0, %s252
      %s272 = sphi 0, %s274
      %s275 = sphi 0, %s272
      %s276 = sphi 0, %s275
      %s292 = sphi 0, %s276
    $region4: #{tpu_custom_call.1} parent=1 // loop_header_branch
      %29 = sbr.rel (%p27) target = $region8
    $region5: #{tpu_custom_call.1} parent=1 // loop_body
      %s31 = ssub.s32 %s26, 1
      %s32 = ssub.s32 %s26, 2
      %s33 = sadd.s32 %s26, 1
      %s34 = ssub.s32 %s26, %s33
      %p35 = scmp.eq.s32.totalorder %s34, 0
      %s37 = sadd.s32 %s36, 1
      %s38 = scalar_select %p35, %s36, %s37
      %p41 = pneg %p35
      %p42 = scmp.eq.s32.totalorder %s26, 1
      %p43 = por %p41, %p42
      %p44 = scmp.ne.s32.totalorder %s36, %s39
      %p45 = scmp.eq.s32.totalorder %s26, 0
      %p46 = por %p44, %p45
      %p47 = scmp.ne.s32.totalorder %s36, %s39
      %p48 = scmp.eq.s32.totalorder %s31, 1
      %p49 = por %p47, %p48
      %p50 = scmp.ne.s32.totalorder %s39, %s40
      %p51 = scmp.eq.s32.totalorder %s31, 0
      %p52 = por %p50, %p51
      %p53 = scmp.ne.s32.totalorder %s39, %s40
      %p54 = scmp.eq.s32.totalorder %s32, 1
      %p55 = por %p53, %p54
      %p57 = scmp.ne.s32.totalorder %s40, %s56
      %p58 = scmp.eq.s32.totalorder %s32, 0
      %p59 = por %p57, %p58
      %s61 = sadd.s32 %s60, 1
      %p64 = scmp.eq.s32.totalorder %s26, 1
      %p65 = scmp.ne.s32.totalorder %s60, %s62
      %p66 = scmp.eq.s32.totalorder %s26, 0
      %p67 = por %p65, %p66
      %p68 = scmp.ne.s32.totalorder %s60, %s62
      %p69 = scmp.eq.s32.totalorder %s31, 1
      %p70 = por %p68, %p69
      %p71 = scmp.ne.s32.totalorder %s62, %s63
      %p72 = scmp.eq.s32.totalorder %s31, 0
      %p73 = por %p71, %p72
      %p74 = scmp.ne.s32.totalorder %s62, %s63
      %p75 = scmp.eq.s32.totalorder %s32, 1
      %p76 = por %p74, %p75
      %p78 = scmp.ne.s32.totalorder %s63, %s77
      %p79 = scmp.eq.s32.totalorder %s32, 0
      %p80 = por %p78, %p79
      %s82 = sadd.s32 %s81, 1
      %p85 = scmp.eq.s32.totalorder %s26, 1
      %p86 = scmp.ne.s32.totalorder %s81, %s83
      %p87 = scmp.eq.s32.totalorder %s26, 0
      %p88 = por %p86, %p87
      %p89 = scmp.ne.s32.totalorder %s81, %s83
      %p90 = scmp.eq.s32.totalorder %s31, 1
      %p91 = por %p89, %p90
      %p92 = scmp.ne.s32.totalorder %s83, %s84
      %p93 = scmp.eq.s32.totalorder %s31, 0
      %p94 = por %p92, %p93
      %p95 = scmp.ne.s32.totalorder %s83, %s84
      %p96 = scmp.eq.s32.totalorder %s32, 1
      %p97 = por %p95, %p96
      %p99 = scmp.ne.s32.totalorder %s84, %s98
      %p100 = scmp.eq.s32.totalorder %s32, 0
      %p101 = por %p99, %p100
      %s103 = sadd.s32 %s102, 1
      %p106 = scmp.eq.s32.totalorder %s26, 1
      %p107 = scmp.ne.s32.totalorder %s102, %s104
      %p108 = scmp.eq.s32.totalorder %s26, 0
      %p109 = por %p107, %p108
      %p110 = scmp.ne.s32.totalorder %s102, %s104
      %p111 = scmp.eq.s32.totalorder %s31, 1
      %p112 = por %p110, %p111
      %p113 = scmp.ne.s32.totalorder %s104, %s105
      %p114 = scmp.eq.s32.totalorder %s31, 0
      %p115 = por %p113, %p114
      %p116 = scmp.ne.s32.totalorder %s104, %s105
      %p117 = scmp.eq.s32.totalorder %s32, 1
      %p118 = por %p116, %p117
      %p120 = scmp.ne.s32.totalorder %s105, %s119
      %p121 = scmp.eq.s32.totalorder %s32, 0
      %p122 = por %p120, %p121
      %s124 = sadd.s32 %s123, 1
      %p127 = scmp.eq.s32.totalorder %s26, 1
      %p128 = scmp.ne.s32.totalorder %s123, %s125
      %p129 = scmp.eq.s32.totalorder %s26, 0
      %p130 = por %p128, %p129
      %p131 = scmp.ne.s32.totalorder %s123, %s125
      %p132 = scmp.eq.s32.totalorder %s31, 1
      %p133 = por %p131, %p132
      %p134 = scmp.ne.s32.totalorder %s125, %s126
      %p135 = scmp.eq.s32.totalorder %s31, 0
      %p136 = por %p134, %p135
      %p137 = scmp.ne.s32.totalorder %s125, %s126
      %p138 = scmp.eq.s32.totalorder %s32, 1
      %p139 = por %p137, %p138
      %p141 = scmp.ne.s32.totalorder %s126, %s140
      %p142 = scmp.eq.s32.totalorder %s32, 0
      %p143 = por %p141, %p142
      %s145 = sadd.s32 %s144, 1
      %p148 = scmp.eq.s32.totalorder %s26, 1
      %p149 = scmp.ne.s32.totalorder %s144, %s146
      %p150 = scmp.eq.s32.totalorder %s26, 0
      %p151 = por %p149, %p150
      %p152 = scmp.ne.s32.totalorder %s144, %s146
      %p153 = scmp.eq.s32.totalorder %s31, 1
      %p154 = por %p152, %p153
      %p155 = scmp.ne.s32.totalorder %s146, %s147
      %p156 = scmp.eq.s32.totalorder %s31, 0
      %p157 = por %p155, %p156
      %p158 = scmp.ne.s32.totalorder %s146, %s147
      %p159 = scmp.eq.s32.totalorder %s32, 1
      %p160 = por %p158, %p159
      %p162 = scmp.ne.s32.totalorder %s147, %s161
      %p163 = scmp.eq.s32.totalorder %s32, 0
      %p164 = por %p162, %p163
      %s166 = sadd.s32 %s165, 1
      %p169 = scmp.eq.s32.totalorder %s26, 1
      %p170 = scmp.ne.s32.totalorder %s165, %s167
      %p171 = scmp.eq.s32.totalorder %s26, 0
      %p172 = por %p170, %p171
      %p173 = scmp.ne.s32.totalorder %s165, %s167
      %p174 = scmp.eq.s32.totalorder %s31, 1
      %p175 = por %p173, %p174
      %p176 = scmp.ne.s32.totalorder %s167, %s168
      %p177 = scmp.eq.s32.totalorder %s31, 0
      %p178 = por %p176, %p177
      %p179 = scmp.ne.s32.totalorder %s167, %s168
      %p180 = scmp.eq.s32.totalorder %s32, 1
      %p181 = por %p179, %p180
      %p183 = scmp.ne.s32.totalorder %s168, %s182
      %p184 = scmp.eq.s32.totalorder %s32, 0
      %p185 = por %p183, %p184
      %s187 = sadd.s32 %s186, 1
      %p190 = scmp.eq.s32.totalorder %s26, 1
      %p191 = scmp.ne.s32.totalorder %s186, %s188
      %p192 = scmp.eq.s32.totalorder %s26, 0
      %p193 = por %p191, %p192
      %p194 = scmp.ne.s32.totalorder %s186, %s188
      %p195 = scmp.eq.s32.totalorder %s31, 1
      %p196 = por %p194, %p195
      %p197 = scmp.ne.s32.totalorder %s188, %s189
      %p198 = scmp.eq.s32.totalorder %s31, 0
      %p199 = por %p197, %p198
      %p200 = scmp.ne.s32.totalorder %s188, %s189
      %p201 = scmp.eq.s32.totalorder %s32, 1
      %p202 = por %p200, %p201
      %p204 = scmp.ne.s32.totalorder %s189, %s203
      %p205 = scmp.eq.s32.totalorder %s32, 0
      %p206 = por %p204, %p205
      %s208 = sadd.s32 %s207, 1
      %p211 = scmp.eq.s32.totalorder %s26, 1
      %p212 = scmp.ne.s32.totalorder %s207, %s209
      %p213 = scmp.eq.s32.totalorder %s26, 0
      %p214 = por %p212, %p213
      %p215 = scmp.ne.s32.totalorder %s207, %s209
      %p216 = scmp.eq.s32.totalorder %s31, 1
      %p217 = por %p215, %p216
      %p218 = scmp.ne.s32.totalorder %s209, %s210
      %p219 = scmp.eq.s32.totalorder %s31, 0
      %p220 = por %p218, %p219
      %p221 = scmp.ne.s32.totalorder %s209, %s210
      %p222 = scmp.eq.s32.totalorder %s32, 1
      %p223 = por %p221, %p222
      %p225 = scmp.ne.s32.totalorder %s210, %s224
      %p226 = scmp.eq.s32.totalorder %s32, 0
      %p227 = por %p225, %p226
      %s229 = sadd.s32 %s228, 1
      %p232 = scmp.eq.s32.totalorder %s26, 1
      %p233 = scmp.ne.s32.totalorder %s228, %s230
      %p234 = scmp.eq.s32.totalorder %s26, 0
      %p235 = por %p233, %p234
      %p236 = scmp.ne.s32.totalorder %s228, %s230
      %p237 = scmp.eq.s32.totalorder %s31, 1
      %p238 = por %p236, %p237
      %p239 = scmp.ne.s32.totalorder %s230, %s231
      %p240 = scmp.eq.s32.totalorder %s31, 0
      %p241 = por %p239, %p240
      %p242 = scmp.ne.s32.totalorder %s230, %s231
      %p243 = scmp.eq.s32.totalorder %s32, 1
      %p244 = por %p242, %p243
      %p246 = scmp.ne.s32.totalorder %s231, %s245
      %p247 = scmp.eq.s32.totalorder %s32, 0
      %p248 = por %p246, %p247
      %s250 = sadd.s32 %s249, 1
      %p253 = scmp.eq.s32.totalorder %s26, 1
      %p254 = scmp.ne.s32.totalorder %s249, %s251
      %p255 = scmp.eq.s32.totalorder %s26, 0
      %p256 = por %p254, %p255
      %p257 = scmp.ne.s32.totalorder %s249, %s251
      %p258 = scmp.eq.s32.totalorder %s31, 1
      %p259 = por %p257, %p258
      %p260 = scmp.ne.s32.totalorder %s251, %s252
      %p261 = scmp.eq.s32.totalorder %s31, 0
      %p262 = por %p260, %p261
      %p263 = scmp.ne.s32.totalorder %s251, %s252
      %p264 = scmp.eq.s32.totalorder %s32, 1
      %p265 = por %p263, %p264
      %p267 = scmp.ne.s32.totalorder %s252, %s266
      %p268 = scmp.eq.s32.totalorder %s32, 0
      %p269 = por %p267, %p268
      %s270 = ssub.s32 %s26, %s33
      %p271 = scmp.eq.s32.totalorder %s270, 0
      %s273 = sadd.s32 %s272, 1
      %s274 = scalar_select %p271, %s272, %s273
      %p277 = pneg %p271
      %p278 = scmp.eq.s32.totalorder %s26, 1
      %p279 = por %p277, %p278
      %p280 = scmp.ne.s32.totalorder %s272, %s275
      %p281 = scmp.eq.s32.totalorder %s26, 0
      %p282 = por %p280, %p281
      %p283 = scmp.ne.s32.totalorder %s272, %s275
      %p284 = scmp.eq.s32.totalorder %s31, 1
      %p285 = por %p283, %p284
      %p286 = scmp.ne.s32.totalorder %s275, %s276
      %p287 = scmp.eq.s32.totalorder %s31, 0
      %p288 = por %p286, %p287
      %p289 = scmp.ne.s32.totalorder %s275, %s276
      %p290 = scmp.eq.s32.totalorder %s32, 1
      %p291 = por %p289, %p290
      %p293 = scmp.ne.s32.totalorder %s276, %s292
      %p294 = scmp.eq.s32.totalorder %s32, 0
      %p295 = por %p293, %p294
      %p296 = scmp.le.s32.totalorder 1, %s26
      %p297 = scmp.lt.s32.totalorder %s26, 3
      %p298 = pnand %p296, %p297
      %p299 = pneg %p298
      // Predicated region
      $region9: #{tpu_custom_call.1} parent=5 // pred_check
        _
      $region10: #{tpu_custom_call.1} parent=5 // pred_check_branch
        %301 = sbr.rel (%p298) target = $region12
      $region11: #{tpu_custom_call.1} parent=5 // pred_region
        %s302 = ssub.s32 %s26, 1
        // Predicated region
        $region13: #{tpu_custom_call.1} parent=11 // pred_check
          %p303 = pneg %p73
        $region14: #{tpu_custom_call.1} parent=11 // pred_check_branch
          %305 = sbr.rel (%p303) target = $region16
        $region15: #{tpu_custom_call.1} parent=11 // pred_region
          %s307 = ssub.s32 6144, 6144
          %308 = vsyncadd [#allocation6], %s307
          %s309 = sshll.u32 [#allocation5], 4
          %s310 = int_to_ptr.vmem [resolvable:$true] %s309
          %315 = dma.hbm_to_vmem [thread:$0]  %s1, 6144, %s310, [#allocation6], 256, 256, 16
        $region16: #{tpu_custom_call.1} parent=11 // pred_fallthru
          _
        // Predicated region
        $region17: #{tpu_custom_call.1} parent=11 // pred_check
          %p316 = pneg %p94
        $region18: #{tpu_custom_call.1} parent=11 // pred_check_branch
          %318 = sbr.rel (%p316) target = $region20
        $region19: #{tpu_custom_call.1} parent=11 // pred_region
          _
        $region20: #{tpu_custom_call.1} parent=11 // pred_fallthru
          _
        // Predicated region
        $region21: #{tpu_custom_call.1} parent=11 // pred_check
          %p319 = pneg %p115
        $region22: #{tpu_custom_call.1} parent=11 // pred_check_branch
          %321 = sbr.rel (%p319) target = $region24
        $region23: #{tpu_custom_call.1} parent=11 // pred_region
          %s323 = ssub.s32 16384, 16384
          %324 = vsyncadd [#allocation6], %s323
          %s325 = sshll.u32 [#allocation7], 4
          %s326 = int_to_ptr.vmem [resolvable:$true] %s325
          %331 = dma.hbm_to_vmem [thread:$0]  %s3, 16384, %s326, [#allocation6], 256, 256, 16
        $region24: #{tpu_custom_call.1} parent=11 // pred_fallthru
          _
        // Predicated region
        $region25: #{tpu_custom_call.1} parent=11 // pred_check
          %p332 = pneg %p136
        $region26: #{tpu_custom_call.1} parent=11 // pred_check_branch
          %334 = sbr.rel (%p332) target = $region28
        $region27: #{tpu_custom_call.1} parent=11 // pred_region
          _
        $region28: #{tpu_custom_call.1} parent=11 // pred_fallthru
          _
        // Predicated region
        $region29: #{tpu_custom_call.1} parent=11 // pred_check
          %p335 = pneg %p157
        $region30: #{tpu_custom_call.1} parent=11 // pred_check_branch
          %337 = sbr.rel (%p335) target = $region32
        $region31: #{tpu_custom_call.1} parent=11 // pred_region
          %s339 = ssub.s32 8192, 8192
          %340 = vsyncadd [#allocation9], %s339
          %s341 = sshll.u32 [#allocation8], 4
          %s342 = int_to_ptr.vmem [resolvable:$true] %s341
          %347 = dma.hbm_to_vmem [thread:$0]  %s5, 8192, %s342, [#allocation9], 128, 128, 8
        $region32: #{tpu_custom_call.1} parent=11 // pred_fallthru
          _
        // Predicated region
        $region33: #{tpu_custom_call.1} parent=11 // pred_check
          %p348 = pneg %p178
        $region34: #{tpu_custom_call.1} parent=11 // pred_check_branch
          %350 = sbr.rel (%p348) target = $region36
        $region35: #{tpu_custom_call.1} parent=11 // pred_region
          _
        $region36: #{tpu_custom_call.1} parent=11 // pred_fallthru
          _
        // Predicated region
        $region37: #{tpu_custom_call.1} parent=11 // pred_check
          %p351 = pneg %p199
        $region38: #{tpu_custom_call.1} parent=11 // pred_check_branch
          %353 = sbr.rel (%p351) target = $region40
        $region39: #{tpu_custom_call.1} parent=11 // pred_region
          %s355 = ssub.s32 4096, 4096
          %356 = vsyncadd [#allocation9], %s355
          %s357 = sshll.u32 [#allocation10], 4
          %s358 = int_to_ptr.vmem [resolvable:$true] %s357
          %363 = dma.hbm_to_vmem [thread:$0]  %s7, 4096, %s358, [#allocation9], 128, 128, 8
        $region40: #{tpu_custom_call.1} parent=11 // pred_fallthru
          _
        // Predicated region
        $region41: #{tpu_custom_call.1} parent=11 // pred_check
          %p364 = pneg %p220
        $region42: #{tpu_custom_call.1} parent=11 // pred_check_branch
          %366 = sbr.rel (%p364) target = $region44
        $region43: #{tpu_custom_call.1} parent=11 // pred_region
          _
        $region44: #{tpu_custom_call.1} parent=11 // pred_fallthru
          _
        // Predicated region
        $region45: #{tpu_custom_call.1} parent=11 // pred_check
          %p367 = pneg %p241
        $region46: #{tpu_custom_call.1} parent=11 // pred_check_branch
          %369 = sbr.rel (%p367) target = $region48
        $region47: #{tpu_custom_call.1} parent=11 // pred_region
          %s371 = ssub.s32 2048, 2048
          %372 = vsyncadd [#allocation12], %s371
          %s373 = sshll.u32 [#allocation11], 4
          %s374 = int_to_ptr.vmem [resolvable:$true] %s373
          %379 = dma.hbm_to_vmem [thread:$0]  %s9, 2048, %s374, [#allocation12], 64, 64, 4
        $region48: #{tpu_custom_call.1} parent=11 // pred_fallthru
          _
        // Predicated region
        $region49: #{tpu_custom_call.1} parent=11 // pred_check
          %p380 = pneg %p262
        $region50: #{tpu_custom_call.1} parent=11 // pred_check_branch
          %382 = sbr.rel (%p380) target = $region52
        $region51: #{tpu_custom_call.1} parent=11 // pred_region
          _
        $region52: #{tpu_custom_call.1} parent=11 // pred_fallthru
          _
      $region12: #{tpu_custom_call.1} parent=5 // pred_fallthru
        _
      %p383 = scmp.lt.s32.totalorder %s26, 2
      // Predicated region
      $region53: #{tpu_custom_call.1} parent=5 // pred_check
        %p384 = pneg %p383
      $region54: #{tpu_custom_call.1} parent=5 // pred_check_branch
        %386 = sbr.rel (%p384) target = $region56
      $region55: #{tpu_custom_call.1} parent=5 // pred_region
        // Predicated region
        $region57: #{tpu_custom_call.1} parent=55 // pred_check
          %p387 = pneg %p46
        $region58: #{tpu_custom_call.1} parent=55 // pred_check_branch
          %389 = sbr.rel (%p387) target = $region60
        $region59: #{tpu_custom_call.1} parent=55 // pred_region
          %s390 = sand.u32 %s36, 1
          %s391 = scalar_lea.sflag [#allocation3], %s390
          %s392 = sand.u32 %s36, 1
          %s393 = smul.addr %s392, 16
          %s394 = scalar_lea.vmem [#allocation2], %s393
          %s395 = smul.u32 2, %s26
          %s397 = ssub.s32 256, 256
          %398 = vsyncadd %s391, %s397
          %s399 = smul.addr %s395, 2
          %s400 = smul.addr %s399, 64
          %s401 = scalar_lea.hbm %s0, %s400
          %s402 = sshll.u32 %s394, 4
          %s403 = int_to_ptr.vmem [resolvable:$true] %s402
          %408 = dma.hbm_to_vmem [thread:$0]  %s401, 256, %s403, %s391, 128, 128, 8
        $region60: #{tpu_custom_call.1} parent=55 // pred_fallthru
          _
      $region56: #{tpu_custom_call.1} parent=5 // pred_fallthru
        _
      %p409 = scmp.le.s32.totalorder 1, %s26
      %p410 = scmp.lt.s32.totalorder %s26, 3
      %p411 = pnand %p409, %p410
      %p412 = pneg %p411
      // Predicated region
      $region61: #{tpu_custom_call.1} parent=5 // pred_check
        _
      $region62: #{tpu_custom_call.1} parent=5 // pred_check_branch
        %414 = sbr.rel (%p411) target = $region64
      $region63: #{tpu_custom_call.1} parent=5 // pred_region
        %s415 = ssub.s32 %s26, 1
        %s416 = sand.u32 %s39, 1
        %s417 = scalar_lea.sflag [#allocation3], %s416
        %s418 = sand.u32 %s39, 1
        %s419 = smul.addr %s418, 16
        %s420 = scalar_lea.vmem [#allocation2], %s419
        // Predicated region
        $region65: #{tpu_custom_call.1} parent=63 // pred_check
          %p421 = pneg %p52
        $region66: #{tpu_custom_call.1} parent=63 // pred_check_branch
          %423 = sbr.rel (%p421) target = $region68
        $region67: #{tpu_custom_call.1} parent=63 // pred_region
          %424 = dma.done %s417, 256
        $region68: #{tpu_custom_call.1} parent=63 // pred_fallthru
          _
        // Predicated region
        $region69: #{tpu_custom_call.1} parent=63 // pred_check
          %p425 = pneg %p73
        $region70: #{tpu_custom_call.1} parent=63 // pred_check_branch
          %427 = sbr.rel (%p425) target = $region72
        $region71: #{tpu_custom_call.1} parent=63 // pred_region
          %428 = dma.done [#allocation6], 6144
        $region72: #{tpu_custom_call.1} parent=63 // pred_fallthru
          _
        // Predicated region
        $region73: #{tpu_custom_call.1} parent=63 // pred_check
          %p429 = pneg %p115
        $region74: #{tpu_custom_call.1} parent=63 // pred_check_branch
          %431 = sbr.rel (%p429) target = $region76
        $region75: #{tpu_custom_call.1} parent=63 // pred_region
          %432 = dma.done [#allocation6], 16384
        $region76: #{tpu_custom_call.1} parent=63 // pred_fallthru
          _
        // Predicated region
        $region77: #{tpu_custom_call.1} parent=63 // pred_check
          %p433 = pneg %p157
        $region78: #{tpu_custom_call.1} parent=63 // pred_check_branch
          %435 = sbr.rel (%p433) target = $region80
        $region79: #{tpu_custom_call.1} parent=63 // pred_region
          %436 = dma.done [#allocation9], 8192
        $region80: #{tpu_custom_call.1} parent=63 // pred_fallthru
          _
        // Predicated region
        $region81: #{tpu_custom_call.1} parent=63 // pred_check
          %p437 = pneg %p199
        $region82: #{tpu_custom_call.1} parent=63 // pred_check_branch
          %439 = sbr.rel (%p437) target = $region84
        $region83: #{tpu_custom_call.1} parent=63 // pred_region
          %440 = dma.done [#allocation9], 4096
        $region84: #{tpu_custom_call.1} parent=63 // pred_fallthru
          _
        // Predicated region
        $region85: #{tpu_custom_call.1} parent=63 // pred_check
          %p441 = pneg %p241
        $region86: #{tpu_custom_call.1} parent=63 // pred_check_branch
          %443 = sbr.rel (%p441) target = $region88
        $region87: #{tpu_custom_call.1} parent=63 // pred_region
          %444 = dma.done [#allocation12], 2048
        $region88: #{tpu_custom_call.1} parent=63 // pred_fallthru
          _
        %s445 = sand.u32 %s39, 1
        %s446 = scalar_lea.sflag [#allocation3], %s445
        %s447 = sand.u32 %s39, 1
        %s448 = smul.addr %s447, 16
        %s449 = scalar_lea.vmem [#allocation2], %s448
        %p450 = pneg %p52
        %p451 = pneg %p49
        %p452 = pneg %p73
        %p453 = pneg %p70
        %p454 = pneg %p94
        %p455 = pneg %p91
        %p456 = pneg %p115
        %p457 = pneg %p112
        %p458 = pneg %p136
        %p459 = pneg %p133
        %p460 = pneg %p157
        %p461 = pneg %p154
        %p462 = pneg %p178
        %p463 = pneg %p175
        %p464 = pneg %p199
        %p465 = pneg %p196
        %p466 = pneg %p220
        %p467 = pneg %p217
        %p468 = pneg %p241
        %p469 = pneg %p238
        %p470 = pneg %p262
        %p471 = pneg %p259
        %p472 = pneg %p288
        %p473 = pneg %p285
        %s474 = sand.u32 %s275, 1
        %s475 = scalar_lea.sflag [#allocation4], %s474
        %s476 = sand.u32 %s275, 1
        %s477 = smul.addr %s476, 16
        %s478 = scalar_lea.vmem [#allocation13], %s477
        %s479 = smul.u32 2, %s31
        %s480 = smul.u32 2, %s31
        %v482 = vld [vmem:[%s420] sm:$0xff]
        %v483 = vld [vmem:[%s420 + $0x8] sm:$0xff]
        %v484 = vld [vmem:[#allocation5] sm:$0xff]
        %v485 = vld [vmem:[#allocation5 + $0x8] sm:$0xff]
        %v486 = vld [vmem:[#allocation5 + $0x10] sm:$0xff]
        %v487 = vld [vmem:[#allocation5 + $0x18] sm:$0xff]
        %v488 = vld [vmem:[#allocation5 + $0x20] sm:$0xff]
        %v489 = vld [vmem:[#allocation5 + $0x28] sm:$0xff]
        %v490 = vld [vmem:[#allocation5 + $0x30] sm:$0xff]
        %v491 = vld [vmem:[#allocation5 + $0x38] sm:$0xff]
        %v492 = vld [vmem:[#allocation5 + $0x40] sm:$0xff]
        %v493 = vld [vmem:[#allocation5 + $0x48] sm:$0xff]
        %v494 = vld [vmem:[#allocation5 + $0x50] sm:$0xff]
        %v495 = vld [vmem:[#allocation5 + $0x58] sm:$0xff]
        %v496 = vld [vmem:[#allocation5 + $0x60] sm:$0xff]
        %v497 = vld [vmem:[#allocation5 + $0x68] sm:$0xff]
        %v498 = vld [vmem:[#allocation5 + $0x70] sm:$0xff]
        %v499 = vld [vmem:[#allocation5 + $0x78] sm:$0xff]
        %v500 = vld [vmem:[#allocation5 + $0x80] sm:$0xff]
        %v501 = vld [vmem:[#allocation5 + $0x88] sm:$0xff]
        %v502 = vld [vmem:[#allocation5 + $0x90] sm:$0xff]
        %v503 = vld [vmem:[#allocation5 + $0x98] sm:$0xff]
        %v504 = vld [vmem:[#allocation5 + $0xa0] sm:$0xff]
        %v505 = vld [vmem:[#allocation5 + $0xa8] sm:$0xff]
        %v506 = vld [vmem:[#allocation5 + $0xb0] sm:$0xff]
        %v507 = vld [vmem:[#allocation5 + $0xb8] sm:$0xff]
        %v508 = vld [vmem:[#allocation5 + $0xc0] sm:$0xff]
        %v509 = vld [vmem:[#allocation5 + $0xc8] sm:$0xff]
        %v510 = vld [vmem:[#allocation5 + $0xd0] sm:$0xff]
        %v511 = vld [vmem:[#allocation5 + $0xd8] sm:$0xff]
        %v512 = vld [vmem:[#allocation5 + $0xe0] sm:$0xff]
        %v513 = vld [vmem:[#allocation5 + $0xe8] sm:$0xff]
        %v514 = vld [vmem:[#allocation5 + $0xf0] sm:$0xff]
        %v515 = vld [vmem:[#allocation5 + $0xf8] sm:$0xff]
        %v516 = vld [vmem:[#allocation5 + $0x100] sm:$0xff]
        %v517 = vld [vmem:[#allocation5 + $0x108] sm:$0xff]
        %v518 = vld [vmem:[#allocation5 + $0x110] sm:$0xff]
        %v519 = vld [vmem:[#allocation5 + $0x118] sm:$0xff]
        %v520 = vld [vmem:[#allocation5 + $0x120] sm:$0xff]
        %v521 = vld [vmem:[#allocation5 + $0x128] sm:$0xff]
        %v522 = vld [vmem:[#allocation5 + $0x130] sm:$0xff]
        %v523 = vld [vmem:[#allocation5 + $0x138] sm:$0xff]
        %v524 = vld [vmem:[#allocation5 + $0x140] sm:$0xff]
        %v525 = vld [vmem:[#allocation5 + $0x148] sm:$0xff]
        %v526 = vld [vmem:[#allocation5 + $0x150] sm:$0xff]
        %v527 = vld [vmem:[#allocation5 + $0x158] sm:$0xff]
        %v528 = vld [vmem:[#allocation5 + $0x160] sm:$0xff]
        %v529 = vld [vmem:[#allocation5 + $0x168] sm:$0xff]
        %v530 = vld [vmem:[#allocation5 + $0x170] sm:$0xff]
        %v531 = vld [vmem:[#allocation5 + $0x178] sm:$0xff]
        %v532 = vld [vmem:[%s2] sm:$0xf]
        %v534 = vlaneseq
        %v535 = vshrl.u32 %v534, 7
        %v536 = vsub.s32 0, %v535
        %v537 = vrot.slane %v532, %v536
        %v538 = vlaneseq
        %v539 = vshrl.u32 %v538, 7
        %v540 = vsub.s32 1, %v539
        %v541 = vrot.slane %v532, %v540
        %v542 = vlaneseq
        %v543 = vshrl.u32 %v542, 7
        %v544 = vsub.s32 2, %v543
        %v545 = vrot.slane %v532, %v544
        %v546 = vlaneseq
        %v547 = vshrl.u32 %v546, 7
        %v548 = vsub.s32 3, %v547
        %v549 = vrot.slane %v532, %v548
        %v556 = vunpack.c.l.b16 %v482
        %v557 = vunpack.c.h.b16 %v482
        %v558 = vunpack.c.l.b16 %v483
        %v559 = vunpack.c.h.b16 %v483
        %v560 = vpack.c.b16 %v558, %v556
        %v561 = vpack.c.b16 %v559, %v557
        %v611 = vunpack.c.l.b16 %v484
        %v612 = vunpack.c.h.b16 %v484
        %v613 = vunpack.c.l.b16 %v485
        %v614 = vunpack.c.h.b16 %v485
        %v615 = vunpack.c.l.b16 %v486
        %v616 = vunpack.c.h.b16 %v486
        %v617 = vunpack.c.l.b16 %v487
        %v618 = vunpack.c.h.b16 %v487
        %v619 = vunpack.c.l.b16 %v488
        %v620 = vunpack.c.h.b16 %v488
        %v621 = vunpack.c.l.b16 %v489
        %v622 = vunpack.c.h.b16 %v489
        %v623 = vunpack.c.l.b16 %v490
        %v624 = vunpack.c.h.b16 %v490
        %v625 = vunpack.c.l.b16 %v491
        %v626 = vunpack.c.h.b16 %v491
        %v627 = vunpack.c.l.b16 %v492
        %v628 = vunpack.c.h.b16 %v492
        %v629 = vunpack.c.l.b16 %v493
        %v630 = vunpack.c.h.b16 %v493
        %v631 = vunpack.c.l.b16 %v494
        %v632 = vunpack.c.h.b16 %v494
        %v633 = vunpack.c.l.b16 %v495
        %v634 = vunpack.c.h.b16 %v495
        %v635 = vunpack.c.l.b16 %v496
        %v636 = vunpack.c.h.b16 %v496
        %v637 = vunpack.c.l.b16 %v497
        %v638 = vunpack.c.h.b16 %v497
        %v639 = vunpack.c.l.b16 %v498
        %v640 = vunpack.c.h.b16 %v498
        %v641 = vunpack.c.l.b16 %v499
        %v642 = vunpack.c.h.b16 %v499
        %v643 = vunpack.c.l.b16 %v500
        %v644 = vunpack.c.h.b16 %v500
        %v645 = vunpack.c.l.b16 %v501
        %v646 = vunpack.c.h.b16 %v501
        %v647 = vunpack.c.l.b16 %v502
        %v648 = vunpack.c.h.b16 %v502
        %v649 = vunpack.c.l.b16 %v503
        %v650 = vunpack.c.h.b16 %v503
        %v651 = vunpack.c.l.b16 %v504
        %v652 = vunpack.c.h.b16 %v504
        %v653 = vunpack.c.l.b16 %v505
        %v654 = vunpack.c.h.b16 %v505
        %v655 = vunpack.c.l.b16 %v506
        %v656 = vunpack.c.h.b16 %v506
        %v657 = vunpack.c.l.b16 %v507
        %v658 = vunpack.c.h.b16 %v507
        %v659 = vunpack.c.l.b16 %v508
        %v660 = vunpack.c.h.b16 %v508
        %v661 = vunpack.c.l.b16 %v509
        %v662 = vunpack.c.h.b16 %v509
        %v663 = vunpack.c.l.b16 %v510
        %v664 = vunpack.c.h.b16 %v510
        %v665 = vunpack.c.l.b16 %v511
        %v666 = vunpack.c.h.b16 %v511
        %v667 = vunpack.c.l.b16 %v512
        %v668 = vunpack.c.h.b16 %v512
        %v669 = vunpack.c.l.b16 %v513
        %v670 = vunpack.c.h.b16 %v513
        %v671 = vunpack.c.l.b16 %v514
        %v672 = vunpack.c.h.b16 %v514
        %v673 = vunpack.c.l.b16 %v515
        %v674 = vunpack.c.h.b16 %v515
        %v675 = vunpack.c.l.b16 %v516
        %v676 = vunpack.c.h.b16 %v516
        %v677 = vunpack.c.l.b16 %v517
        %v678 = vunpack.c.h.b16 %v517
        %v679 = vunpack.c.l.b16 %v518
        %v680 = vunpack.c.h.b16 %v518
        %v681 = vunpack.c.l.b16 %v519
        %v682 = vunpack.c.h.b16 %v519
        %v683 = vunpack.c.l.b16 %v520
        %v684 = vunpack.c.h.b16 %v520
        %v685 = vunpack.c.l.b16 %v521
        %v686 = vunpack.c.h.b16 %v521
        %v687 = vunpack.c.l.b16 %v522
        %v688 = vunpack.c.h.b16 %v522
        %v689 = vunpack.c.l.b16 %v523
        %v690 = vunpack.c.h.b16 %v523
        %v691 = vunpack.c.l.b16 %v524
        %v692 = vunpack.c.h.b16 %v524
        %v693 = vunpack.c.l.b16 %v525
        %v694 = vunpack.c.h.b16 %v525
        %v695 = vunpack.c.l.b16 %v526
        %v696 = vunpack.c.h.b16 %v526
        %v697 = vunpack.c.l.b16 %v527
        %v698 = vunpack.c.h.b16 %v527
        %v699 = vunpack.c.l.b16 %v528
        %v700 = vunpack.c.h.b16 %v528
        %v701 = vunpack.c.l.b16 %v529
        %v702 = vunpack.c.h.b16 %v529
        %v703 = vunpack.c.l.b16 %v530
        %v704 = vunpack.c.h.b16 %v530
        %v705 = vunpack.c.l.b16 %v531
        %v706 = vunpack.c.h.b16 %v531
        %v707 = vpack.c.b16 %v615, %v611
        %v708 = vpack.c.b16 %v616, %v612
        %v709 = vpack.c.b16 %v617, %v613
        %v710 = vpack.c.b16 %v618, %v614
        %v711 = vpack.c.b16 %v623, %v619
        %v712 = vpack.c.b16 %v624, %v620
        %v713 = vpack.c.b16 %v625, %v621
        %v714 = vpack.c.b16 %v626, %v622
        %v715 = vpack.c.b16 %v631, %v627
        %v716 = vpack.c.b16 %v632, %v628
        %v717 = vpack.c.b16 %v633, %v629
        %v718 = vpack.c.b16 %v634, %v630
        %v719 = vpack.c.b16 %v639, %v635
        %v720 = vpack.c.b16 %v640, %v636
        %v721 = vpack.c.b16 %v641, %v637
        %v722 = vpack.c.b16 %v642, %v638
        %v723 = vpack.c.b16 %v647, %v643
        %v724 = vpack.c.b16 %v648, %v644
        %v725 = vpack.c.b16 %v649, %v645
        %v726 = vpack.c.b16 %v650, %v646
        %v727 = vpack.c.b16 %v655, %v651
        %v728 = vpack.c.b16 %v656, %v652
        %v729 = vpack.c.b16 %v657, %v653
        %v730 = vpack.c.b16 %v658, %v654
        %v731 = vpack.c.b16 %v663, %v659
        %v732 = vpack.c.b16 %v664, %v660
        %v733 = vpack.c.b16 %v665, %v661
        %v734 = vpack.c.b16 %v666, %v662
        %v735 = vpack.c.b16 %v671, %v667
        %v736 = vpack.c.b16 %v672, %v668
        %v737 = vpack.c.b16 %v673, %v669
        %v738 = vpack.c.b16 %v674, %v670
        %v739 = vpack.c.b16 %v679, %v675
        %v740 = vpack.c.b16 %v680, %v676
        %v741 = vpack.c.b16 %v681, %v677
        %v742 = vpack.c.b16 %v682, %v678
        %v743 = vpack.c.b16 %v687, %v683
        %v744 = vpack.c.b16 %v688, %v684
        %v745 = vpack.c.b16 %v689, %v685
        %v746 = vpack.c.b16 %v690, %v686
        %v747 = vpack.c.b16 %v695, %v691
        %v748 = vpack.c.b16 %v696, %v692
        %v749 = vpack.c.b16 %v697, %v693
        %v750 = vpack.c.b16 %v698, %v694
        %v751 = vpack.c.b16 %v703, %v699
        %v752 = vpack.c.b16 %v704, %v700
        %v753 = vpack.c.b16 %v705, %v701
        %v754 = vpack.c.b16 %v706, %v702
        %vm803 = vcmask 523264
        %v805 = vsel %vm803, %v561, 0
        %807 = vmatprep.subr.bf16.mxu0 %v708
        %808 = vmatpush1.bf16.msra.mxu0 %v707
        %809 = vmatprep.subr.bf16.mxu0 %v712
        %810 = vmatpush1.bf16.msra.mxu0 %v711
        %811 = vmatprep.subr.bf16.mxu0 %v716
        %812 = vmatpush1.bf16.msra.mxu0 %v715
        %813 = vmatprep.subr.bf16.mxu0 %v720
        %814 = vmatpush1.bf16.msra.mxu0 %v719
        %815 = vmatprep.subr.bf16.mxu0 %v724
        %816 = vmatpush1.bf16.msra.mxu0 %v723
        %817 = vmatprep.subr.bf16.mxu0 %v728
        %818 = vmatpush1.bf16.msra.mxu0 %v727
        %819 = vmatprep.subr.bf16.mxu0 %v732
        %820 = vmatpush1.bf16.msra.mxu0 %v731
        %821 = vmatprep.subr.bf16.mxu0 %v736
        %822 = vmatpush1.bf16.msra.mxu0 %v735
        %823 = vmatprep.subr.bf16.mxu0 %v740
        %824 = vmatpush1.bf16.msra.mxu0 %v739
        %825 = vmatprep.subr.bf16.mxu0 %v744
        %826 = vmatpush1.bf16.msra.mxu0 %v743
        %827 = vmatprep.subr.bf16.mxu0 %v748
        %828 = vmatpush1.bf16.msra.mxu0 %v747
        %829 = vmatprep.subr.bf16.mxu0 %v752
        %830 = vmatpush1.bf16.msra.mxu0 %v751
        %831 = vmatprep.subr.bf16.mxu0 0
        %832 = vmatpush1.bf16.msra.mxu0 0
        %833 = vmatprep.subr.bf16.mxu0 0
        %834 = vmatpush1.bf16.msra.mxu0 0
        %835 = vmatprep.subr.bf16.mxu0 0
        %836 = vmatpush1.bf16.msra.mxu0 0
        %837 = vmatprep.subr.bf16.mxu0 0
        %838 = vmatpush1.bf16.msra.mxu0 0
        %839 = vmatprep.mubr.bf16.mxu0 %v805
        %840 = vmatmul.mubr.bf16.gmra.mrb[0].mxu0 %v560
        %v841 = vpop.f32.mrb[0].mxu0
        %v842 = vadd.f32 %v537, %v841
        %v843 = vpop.f32.mrb[0].mxu0
        %v844 = vadd.f32 %v541, %v843
        %v845 = vpop.f32.mrb[0].mxu0
        %v846 = vadd.f32 %v537, %v845
        %v847 = vpop.f32.mrb[0].mxu0
        %v848 = vadd.f32 %v541, %v847
        %849 = vdwg.mxu0
        %850 = vmatprep.subr.bf16.mxu0 %v710
        %851 = vmatpush1.bf16.msra.mxu0 %v709
        %852 = vmatprep.subr.bf16.mxu0 %v714
        %853 = vmatpush1.bf16.msra.mxu0 %v713
        %854 = vmatprep.subr.bf16.mxu0 %v718
        %855 = vmatpush1.bf16.msra.mxu0 %v717
        %856 = vmatprep.subr.bf16.mxu0 %v722
        %857 = vmatpush1.bf16.msra.mxu0 %v721
        %858 = vmatprep.subr.bf16.mxu0 %v726
        %859 = vmatpush1.bf16.msra.mxu0 %v725
        %860 = vmatprep.subr.bf16.mxu0 %v730
        %861 = vmatpush1.bf16.msra.mxu0 %v729
        %862 = vmatprep.subr.bf16.mxu0 %v734
        %863 = vmatpush1.bf16.msra.mxu0 %v733
        %864 = vmatprep.subr.bf16.mxu0 %v738
        %865 = vmatpush1.bf16.msra.mxu0 %v737
        %866 = vmatprep.subr.bf16.mxu0 %v742
        %867 = vmatpush1.bf16.msra.mxu0 %v741
        %868 = vmatprep.subr.bf16.mxu0 %v746
        %869 = vmatpush1.bf16.msra.mxu0 %v745
        %870 = vmatprep.subr.bf16.mxu0 %v750
        %871 = vmatpush1.bf16.msra.mxu0 %v749
        %872 = vmatprep.subr.bf16.mxu0 %v754
        %873 = vmatpush1.bf16.msra.mxu0 %v753
        %874 = vmatprep.subr.bf16.mxu0 0
        %875 = vmatpush1.bf16.msra.mxu0 0
        %876 = vmatprep.subr.bf16.mxu0 0
        %877 = vmatpush1.bf16.msra.mxu0 0
        %878 = vmatprep.subr.bf16.mxu0 0
        %879 = vmatpush1.bf16.msra.mxu0 0
        %880 = vmatprep.subr.bf16.mxu0 0
        %881 = vmatpush1.bf16.msra.mxu0 0
        %882 = vmatprep.mubr.bf16.mxu0 %v805
        %883 = vmatmul.mubr.bf16.gmra.mrb[0].mxu0 %v560
        %v884 = vpop.f32.mrb[0].mxu0
        %v885 = vadd.f32 %v545, %v884
        %v886 = vpop.f32.mrb[0].mxu0
        %v887 = vadd.f32 %v549, %v886
        %v888 = vpop.f32.mrb[0].mxu0
        %v889 = vadd.f32 %v545, %v888
        %v890 = vpop.f32.mrb[0].mxu0
        %v891 = vadd.f32 %v549, %v890
        %892 = vdwg.mxu0
        %v893 = vmax.f32 %v842, 0.0
        %v894 = vmax.f32 %v844, 0.0
        %v895 = vmax.f32 %v885, 0.0
        %v896 = vmax.f32 %v887, 0.0
        %v897 = vmax.f32 %v846, 0.0
        %v898 = vmax.f32 %v848, 0.0
        %v899 = vmax.f32 %v889, 0.0
        %v900 = vmax.f32 %v891, 0.0
        %v901 = vpack.c.bf16 %v897, %v893
        %v902 = vpack.c.bf16 %v898, %v894
        %v903 = vpack.c.bf16 %v899, %v895
        %v904 = vpack.c.bf16 %v900, %v896
        %v905 = vld [vmem:[#allocation7] sm:$0xff]
        %v906 = vld [vmem:[#allocation7 + $0x8] sm:$0xff]
        %v907 = vld [vmem:[#allocation7 + $0x10] sm:$0xff]
        %v908 = vld [vmem:[#allocation7 + $0x18] sm:$0xff]
        %v909 = vld [vmem:[#allocation7 + $0x20] sm:$0xff]
        %v910 = vld [vmem:[#allocation7 + $0x28] sm:$0xff]
        %v911 = vld [vmem:[#allocation7 + $0x30] sm:$0xff]
        %v912 = vld [vmem:[#allocation7 + $0x38] sm:$0xff]
        %v913 = vld [vmem:[#allocation7 + $0x40] sm:$0xff]
        %v914 = vld [vmem:[#allocation7 + $0x48] sm:$0xff]
        %v915 = vld [vmem:[#allocation7 + $0x50] sm:$0xff]
        %v916 = vld [vmem:[#allocation7 + $0x58] sm:$0xff]
        %v917 = vld [vmem:[#allocation7 + $0x60] sm:$0xff]
        %v918 = vld [vmem:[#allocation7 + $0x68] sm:$0xff]
        %v919 = vld [vmem:[#allocation7 + $0x70] sm:$0xff]
        %v920 = vld [vmem:[#allocation7 + $0x78] sm:$0xff]
        %v921 = vld [vmem:[#allocation7 + $0x80] sm:$0xff]
        %v922 = vld [vmem:[#allocation7 + $0x88] sm:$0xff]
        %v923 = vld [vmem:[#allocation7 + $0x90] sm:$0xff]
        %v924 = vld [vmem:[#allocation7 + $0x98] sm:$0xff]
        %v925 = vld [vmem:[#allocation7 + $0xa0] sm:$0xff]
        %v926 = vld [vmem:[#allocation7 + $0xa8] sm:$0xff]
        %v927 = vld [vmem:[#allocation7 + $0xb0] sm:$0xff]
        %v928 = vld [vmem:[#allocation7 + $0xb8] sm:$0xff]
        %v929 = vld [vmem:[#allocation7 + $0xc0] sm:$0xff]
        %v930 = vld [vmem:[#allocation7 + $0xc8] sm:$0xff]
        %v931 = vld [vmem:[#allocation7 + $0xd0] sm:$0xff]
        %v932 = vld [vmem:[#allocation7 + $0xd8] sm:$0xff]
        %v933 = vld [vmem:[#allocation7 + $0xe0] sm:$0xff]
        %v934 = vld [vmem:[#allocation7 + $0xe8] sm:$0xff]
        %v935 = vld [vmem:[#allocation7 + $0xf0] sm:$0xff]
        %v936 = vld [vmem:[#allocation7 + $0xf8] sm:$0xff]
        %v937 = vld [vmem:[#allocation7 + $0x100] sm:$0xff]
        %v938 = vld [vmem:[#allocation7 + $0x108] sm:$0xff]
        %v939 = vld [vmem:[#allocation7 + $0x110] sm:$0xff]
        %v940 = vld [vmem:[#allocation7 + $0x118] sm:$0xff]
        %v941 = vld [vmem:[#allocation7 + $0x120] sm:$0xff]
        %v942 = vld [vmem:[#allocation7 + $0x128] sm:$0xff]
        %v943 = vld [vmem:[#allocation7 + $0x130] sm:$0xff]
        %v944 = vld [vmem:[#allocation7 + $0x138] sm:$0xff]
        %v945 = vld [vmem:[#allocation7 + $0x140] sm:$0xff]
        %v946 = vld [vmem:[#allocation7 + $0x148] sm:$0xff]
        %v947 = vld [vmem:[#allocation7 + $0x150] sm:$0xff]
        %v948 = vld [vmem:[#allocation7 + $0x158] sm:$0xff]
        %v949 = vld [vmem:[#allocation7 + $0x160] sm:$0xff]
        %v950 = vld [vmem:[#allocation7 + $0x168] sm:$0xff]
        %v951 = vld [vmem:[#allocation7 + $0x170] sm:$0xff]
        %v952 = vld [vmem:[#allocation7 + $0x178] sm:$0xff]
        %v953 = vld [vmem:[#allocation7 + $0x180] sm:$0xff]
        %v954 = vld [vmem:[#allocation7 + $0x188] sm:$0xff]
        %v955 = vld [vmem:[#allocation7 + $0x190] sm:$0xff]
        %v956 = vld [vmem:[#allocation7 + $0x198] sm:$0xff]
        %v957 = vld [vmem:[#allocation7 + $0x1a0] sm:$0xff]
        %v958 = vld [vmem:[#allocation7 + $0x1a8] sm:$0xff]
        %v959 = vld [vmem:[#allocation7 + $0x1b0] sm:$0xff]
        %v960 = vld [vmem:[#allocation7 + $0x1b8] sm:$0xff]
        %v961 = vld [vmem:[#allocation7 + $0x1c0] sm:$0xff]
        %v962 = vld [vmem:[#allocation7 + $0x1c8] sm:$0xff]
        %v963 = vld [vmem:[#allocation7 + $0x1d0] sm:$0xff]
        %v964 = vld [vmem:[#allocation7 + $0x1d8] sm:$0xff]
        %v965 = vld [vmem:[#allocation7 + $0x1e0] sm:$0xff]
        %v966 = vld [vmem:[#allocation7 + $0x1e8] sm:$0xff]
        %v967 = vld [vmem:[#allocation7 + $0x1f0] sm:$0xff]
        %v968 = vld [vmem:[#allocation7 + $0x1f8] sm:$0xff]
        %v969 = vld [vmem:[#allocation7 + $0x200] sm:$0xff]
        %v970 = vld [vmem:[#allocation7 + $0x208] sm:$0xff]
        %v971 = vld [vmem:[#allocation7 + $0x210] sm:$0xff]
        %v972 = vld [vmem:[#allocation7 + $0x218] sm:$0xff]
        %v973 = vld [vmem:[#allocation7 + $0x220] sm:$0xff]
        %v974 = vld [vmem:[#allocation7 + $0x228] sm:$0xff]
        %v975 = vld [vmem:[#allocation7 + $0x230] sm:$0xff]
        %v976 = vld [vmem:[#allocation7 + $0x238] sm:$0xff]
        %v977 = vld [vmem:[#allocation7 + $0x240] sm:$0xff]
        %v978 = vld [vmem:[#allocation7 + $0x248] sm:$0xff]
        %v979 = vld [vmem:[#allocation7 + $0x250] sm:$0xff]
        %v980 = vld [vmem:[#allocation7 + $0x258] sm:$0xff]
        %v981 = vld [vmem:[#allocation7 + $0x260] sm:$0xff]
        %v982 = vld [vmem:[#allocation7 + $0x268] sm:$0xff]
        %v983 = vld [vmem:[#allocation7 + $0x270] sm:$0xff]
        %v984 = vld [vmem:[#allocation7 + $0x278] sm:$0xff]
        %v985 = vld [vmem:[#allocation7 + $0x280] sm:$0xff]
        %v986 = vld [vmem:[#allocation7 + $0x288] sm:$0xff]
        %v987 = vld [vmem:[#allocation7 + $0x290] sm:$0xff]
        %v988 = vld [vmem:[#allocation7 + $0x298] sm:$0xff]
        %v989 = vld [vmem:[#allocation7 + $0x2a0] sm:$0xff]
        %v990 = vld [vmem:[#allocation7 + $0x2a8] sm:$0xff]
        %v991 = vld [vmem:[#allocation7 + $0x2b0] sm:$0xff]
        %v992 = vld [vmem:[#allocation7 + $0x2b8] sm:$0xff]
        %v993 = vld [vmem:[#allocation7 + $0x2c0] sm:$0xff]
        %v994 = vld [vmem:[#allocation7 + $0x2c8] sm:$0xff]
        %v995 = vld [vmem:[#allocation7 + $0x2d0] sm:$0xff]
        %v996 = vld [vmem:[#allocation7 + $0x2d8] sm:$0xff]
        %v997 = vld [vmem:[#allocation7 + $0x2e0] sm:$0xff]
        %v998 = vld [vmem:[#allocation7 + $0x2e8] sm:$0xff]
        %v999 = vld [vmem:[#allocation7 + $0x2f0] sm:$0xff]
        %v1000 = vld [vmem:[#allocation7 + $0x2f8] sm:$0xff]
        %v1001 = vld [vmem:[#allocation7 + $0x300] sm:$0xff]
        %v1002 = vld [vmem:[#allocation7 + $0x308] sm:$0xff]
        %v1003 = vld [vmem:[#allocation7 + $0x310] sm:$0xff]
        %v1004 = vld [vmem:[#allocation7 + $0x318] sm:$0xff]
        %v1005 = vld [vmem:[#allocation7 + $0x320] sm:$0xff]
        %v1006 = vld [vmem:[#allocation7 + $0x328] sm:$0xff]
        %v1007 = vld [vmem:[#allocation7 + $0x330] sm:$0xff]
        %v1008 = vld [vmem:[#allocation7 + $0x338] sm:$0xff]
        %v1009 = vld [vmem:[#allocation7 + $0x340] sm:$0xff]
        %v1010 = vld [vmem:[#allocation7 + $0x348] sm:$0xff]
        %v1011 = vld [vmem:[#allocation7 + $0x350] sm:$0xff]
        %v1012 = vld [vmem:[#allocation7 + $0x358] sm:$0xff]
        %v1013 = vld [vmem:[#allocation7 + $0x360] sm:$0xff]
        %v1014 = vld [vmem:[#allocation7 + $0x368] sm:$0xff]
        %v1015 = vld [vmem:[#allocation7 + $0x370] sm:$0xff]
        %v1016 = vld [vmem:[#allocation7 + $0x378] sm:$0xff]
        %v1017 = vld [vmem:[#allocation7 + $0x380] sm:$0xff]
        %v1018 = vld [vmem:[#allocation7 + $0x388] sm:$0xff]
        %v1019 = vld [vmem:[#allocation7 + $0x390] sm:$0xff]
        %v1020 = vld [vmem:[#allocation7 + $0x398] sm:$0xff]
        %v1021 = vld [vmem:[#allocation7 + $0x3a0] sm:$0xff]
        %v1022 = vld [vmem:[#allocation7 + $0x3a8] sm:$0xff]
        %v1023 = vld [vmem:[#allocation7 + $0x3b0] sm:$0xff]
        %v1024 = vld [vmem:[#allocation7 + $0x3b8] sm:$0xff]
        %v1025 = vld [vmem:[#allocation7 + $0x3c0] sm:$0xff]
        %v1026 = vld [vmem:[#allocation7 + $0x3c8] sm:$0xff]
        %v1027 = vld [vmem:[#allocation7 + $0x3d0] sm:$0xff]
        %v1028 = vld [vmem:[#allocation7 + $0x3d8] sm:$0xff]
        %v1029 = vld [vmem:[#allocation7 + $0x3e0] sm:$0xff]
        %v1030 = vld [vmem:[#allocation7 + $0x3e8] sm:$0xff]
        %v1031 = vld [vmem:[#allocation7 + $0x3f0] sm:$0xff]
        %v1032 = vld [vmem:[#allocation7 + $0x3f8] sm:$0xff]
        %v1033 = vld [vmem:[%s4] sm:$0xf]
        %v1035 = vlaneseq
        %v1036 = vshrl.u32 %v1035, 7
        %v1037 = vsub.s32 0, %v1036
        %v1038 = vrot.slane %v1033, %v1037
        %v1039 = vlaneseq
        %v1040 = vshrl.u32 %v1039, 7
        %v1041 = vsub.s32 1, %v1040
        %v1042 = vrot.slane %v1033, %v1041
        %v1043 = vlaneseq
        %v1044 = vshrl.u32 %v1043, 7
        %v1045 = vsub.s32 2, %v1044
        %v1046 = vrot.slane %v1033, %v1045
        %v1047 = vlaneseq
        %v1048 = vshrl.u32 %v1047, 7
        %v1049 = vsub.s32 3, %v1048
        %v1050 = vrot.slane %v1033, %v1049
        %v1183 = vunpack.c.l.b16 %v905
        %v1184 = vunpack.c.h.b16 %v905
        %v1185 = vunpack.c.l.b16 %v906
        %v1186 = vunpack.c.h.b16 %v906
        %v1187 = vunpack.c.l.b16 %v907
        %v1188 = vunpack.c.h.b16 %v907
        %v1189 = vunpack.c.l.b16 %v908
        %v1190 = vunpack.c.h.b16 %v908
        %v1191 = vunpack.c.l.b16 %v909
        %v1192 = vunpack.c.h.b16 %v909
        %v1193 = vunpack.c.l.b16 %v910
        %v1194 = vunpack.c.h.b16 %v910
        %v1195 = vunpack.c.l.b16 %v911
        %v1196 = vunpack.c.h.b16 %v911
        %v1197 = vunpack.c.l.b16 %v912
        %v1198 = vunpack.c.h.b16 %v912
        %v1199 = vunpack.c.l.b16 %v913
        %v1200 = vunpack.c.h.b16 %v913
        %v1201 = vunpack.c.l.b16 %v914
        %v1202 = vunpack.c.h.b16 %v914
        %v1203 = vunpack.c.l.b16 %v915
        %v1204 = vunpack.c.h.b16 %v915
        %v1205 = vunpack.c.l.b16 %v916
        %v1206 = vunpack.c.h.b16 %v916
        %v1207 = vunpack.c.l.b16 %v917
        %v1208 = vunpack.c.h.b16 %v917
        %v1209 = vunpack.c.l.b16 %v918
        %v1210 = vunpack.c.h.b16 %v918
        %v1211 = vunpack.c.l.b16 %v919
        %v1212 = vunpack.c.h.b16 %v919
        %v1213 = vunpack.c.l.b16 %v920
        %v1214 = vunpack.c.h.b16 %v920
        %v1215 = vunpack.c.l.b16 %v921
        %v1216 = vunpack.c.h.b16 %v921
        %v1217 = vunpack.c.l.b16 %v922
        %v1218 = vunpack.c.h.b16 %v922
        %v1219 = vunpack.c.l.b16 %v923
        %v1220 = vunpack.c.h.b16 %v923
        %v1221 = vunpack.c.l.b16 %v924
        %v1222 = vunpack.c.h.b16 %v924
        %v1223 = vunpack.c.l.b16 %v925
        %v1224 = vunpack.c.h.b16 %v925
        %v1225 = vunpack.c.l.b16 %v926
        %v1226 = vunpack.c.h.b16 %v926
        %v1227 = vunpack.c.l.b16 %v927
        %v1228 = vunpack.c.h.b16 %v927
        %v1229 = vunpack.c.l.b16 %v928
        %v1230 = vunpack.c.h.b16 %v928
        %v1231 = vunpack.c.l.b16 %v929
        %v1232 = vunpack.c.h.b16 %v929
        %v1233 = vunpack.c.l.b16 %v930
        %v1234 = vunpack.c.h.b16 %v930
        %v1235 = vunpack.c.l.b16 %v931
        %v1236 = vunpack.c.h.b16 %v931
        %v1237 = vunpack.c.l.b16 %v932
        %v1238 = vunpack.c.h.b16 %v932
        %v1239 = vunpack.c.l.b16 %v933
        %v1240 = vunpack.c.h.b16 %v933
        %v1241 = vunpack.c.l.b16 %v934
        %v1242 = vunpack.c.h.b16 %v934
        %v1243 = vunpack.c.l.b16 %v935
        %v1244 = vunpack.c.h.b16 %v935
        %v1245 = vunpack.c.l.b16 %v936
        %v1246 = vunpack.c.h.b16 %v936
        %v1247 = vunpack.c.l.b16 %v937
        %v1248 = vunpack.c.h.b16 %v937
        %v1249 = vunpack.c.l.b16 %v938
        %v1250 = vunpack.c.h.b16 %v938
        %v1251 = vunpack.c.l.b16 %v939
        %v1252 = vunpack.c.h.b16 %v939
        %v1253 = vunpack.c.l.b16 %v940
        %v1254 = vunpack.c.h.b16 %v940
        %v1255 = vunpack.c.l.b16 %v941
        %v1256 = vunpack.c.h.b16 %v941
        %v1257 = vunpack.c.l.b16 %v942
        %v1258 = vunpack.c.h.b16 %v942
        %v1259 = vunpack.c.l.b16 %v943
        %v1260 = vunpack.c.h.b16 %v943
        %v1261 = vunpack.c.l.b16 %v944
        %v1262 = vunpack.c.h.b16 %v944
        %v1263 = vunpack.c.l.b16 %v945
        %v1264 = vunpack.c.h.b16 %v945
        %v1265 = vunpack.c.l.b16 %v946
        %v1266 = vunpack.c.h.b16 %v946
        %v1267 = vunpack.c.l.b16 %v947
        %v1268 = vunpack.c.h.b16 %v947
        %v1269 = vunpack.c.l.b16 %v948
        %v1270 = vunpack.c.h.b16 %v948
        %v1271 = vunpack.c.l.b16 %v949
        %v1272 = vunpack.c.h.b16 %v949
        %v1273 = vunpack.c.l.b16 %v950
        %v1274 = vunpack.c.h.b16 %v950
        %v1275 = vunpack.c.l.b16 %v951
        %v1276 = vunpack.c.h.b16 %v951
        %v1277 = vunpack.c.l.b16 %v952
        %v1278 = vunpack.c.h.b16 %v952
        %v1279 = vunpack.c.l.b16 %v953
        %v1280 = vunpack.c.h.b16 %v953
        %v1281 = vunpack.c.l.b16 %v954
        %v1282 = vunpack.c.h.b16 %v954
        %v1283 = vunpack.c.l.b16 %v955
        %v1284 = vunpack.c.h.b16 %v955
        %v1285 = vunpack.c.l.b16 %v956
        %v1286 = vunpack.c.h.b16 %v956
        %v1287 = vunpack.c.l.b16 %v957
        %v1288 = vunpack.c.h.b16 %v957
        %v1289 = vunpack.c.l.b16 %v958
        %v1290 = vunpack.c.h.b16 %v958
        %v1291 = vunpack.c.l.b16 %v959
        %v1292 = vunpack.c.h.b16 %v959
        %v1293 = vunpack.c.l.b16 %v960
        %v1294 = vunpack.c.h.b16 %v960
        %v1295 = vunpack.c.l.b16 %v961
        %v1296 = vunpack.c.h.b16 %v961
        %v1297 = vunpack.c.l.b16 %v962
        %v1298 = vunpack.c.h.b16 %v962
        %v1299 = vunpack.c.l.b16 %v963
        %v1300 = vunpack.c.h.b16 %v963
        %v1301 = vunpack.c.l.b16 %v964
        %v1302 = vunpack.c.h.b16 %v964
        %v1303 = vunpack.c.l.b16 %v965
        %v1304 = vunpack.c.h.b16 %v965
        %v1305 = vunpack.c.l.b16 %v966
        %v1306 = vunpack.c.h.b16 %v966
        %v1307 = vunpack.c.l.b16 %v967
        %v1308 = vunpack.c.h.b16 %v967
        %v1309 = vunpack.c.l.b16 %v968
        %v1310 = vunpack.c.h.b16 %v968
        %v1311 = vunpack.c.l.b16 %v969
        %v1312 = vunpack.c.h.b16 %v969
        %v1313 = vunpack.c.l.b16 %v970
        %v1314 = vunpack.c.h.b16 %v970
        %v1315 = vunpack.c.l.b16 %v971
        %v1316 = vunpack.c.h.b16 %v971
        %v1317 = vunpack.c.l.b16 %v972
        %v1318 = vunpack.c.h.b16 %v972
        %v1319 = vunpack.c.l.b16 %v973
        %v1320 = vunpack.c.h.b16 %v973
        %v1321 = vunpack.c.l.b16 %v974
        %v1322 = vunpack.c.h.b16 %v974
        %v1323 = vunpack.c.l.b16 %v975
        %v1324 = vunpack.c.h.b16 %v975
        %v1325 = vunpack.c.l.b16 %v976
        %v1326 = vunpack.c.h.b16 %v976
        %v1327 = vunpack.c.l.b16 %v977
        %v1328 = vunpack.c.h.b16 %v977
        %v1329 = vunpack.c.l.b16 %v978
        %v1330 = vunpack.c.h.b16 %v978
        %v1331 = vunpack.c.l.b16 %v979
        %v1332 = vunpack.c.h.b16 %v979
        %v1333 = vunpack.c.l.b16 %v980
        %v1334 = vunpack.c.h.b16 %v980
        %v1335 = vunpack.c.l.b16 %v981
        %v1336 = vunpack.c.h.b16 %v981
        %v1337 = vunpack.c.l.b16 %v982
        %v1338 = vunpack.c.h.b16 %v982
        %v1339 = vunpack.c.l.b16 %v983
        %v1340 = vunpack.c.h.b16 %v983
        %v1341 = vunpack.c.l.b16 %v984
        %v1342 = vunpack.c.h.b16 %v984
        %v1343 = vunpack.c.l.b16 %v985
        %v1344 = vunpack.c.h.b16 %v985
        %v1345 = vunpack.c.l.b16 %v986
        %v1346 = vunpack.c.h.b16 %v986
        %v1347 = vunpack.c.l.b16 %v987
        %v1348 = vunpack.c.h.b16 %v987
        %v1349 = vunpack.c.l.b16 %v988
        %v1350 = vunpack.c.h.b16 %v988
        %v1351 = vunpack.c.l.b16 %v989
        %v1352 = vunpack.c.h.b16 %v989
        %v1353 = vunpack.c.l.b16 %v990
        %v1354 = vunpack.c.h.b16 %v990
        %v1355 = vunpack.c.l.b16 %v991
        %v1356 = vunpack.c.h.b16 %v991
        %v1357 = vunpack.c.l.b16 %v992
        %v1358 = vunpack.c.h.b16 %v992
        %v1359 = vunpack.c.l.b16 %v993
        %v1360 = vunpack.c.h.b16 %v993
        %v1361 = vunpack.c.l.b16 %v994
        %v1362 = vunpack.c.h.b16 %v994
        %v1363 = vunpack.c.l.b16 %v995
        %v1364 = vunpack.c.h.b16 %v995
        %v1365 = vunpack.c.l.b16 %v996
        %v1366 = vunpack.c.h.b16 %v996
        %v1367 = vunpack.c.l.b16 %v997
        %v1368 = vunpack.c.h.b16 %v997
        %v1369 = vunpack.c.l.b16 %v998
        %v1370 = vunpack.c.h.b16 %v998
        %v1371 = vunpack.c.l.b16 %v999
        %v1372 = vunpack.c.h.b16 %v999
        %v1373 = vunpack.c.l.b16 %v1000
        %v1374 = vunpack.c.h.b16 %v1000
        %v1375 = vunpack.c.l.b16 %v1001
        %v1376 = vunpack.c.h.b16 %v1001
        %v1377 = vunpack.c.l.b16 %v1002
        %v1378 = vunpack.c.h.b16 %v1002
        %v1379 = vunpack.c.l.b16 %v1003
        %v1380 = vunpack.c.h.b16 %v1003
        %v1381 = vunpack.c.l.b16 %v1004
        %v1382 = vunpack.c.h.b16 %v1004
        %v1383 = vunpack.c.l.b16 %v1005
        %v1384 = vunpack.c.h.b16 %v1005
        %v1385 = vunpack.c.l.b16 %v1006
        %v1386 = vunpack.c.h.b16 %v1006
        %v1387 = vunpack.c.l.b16 %v1007
        %v1388 = vunpack.c.h.b16 %v1007
        %v1389 = vunpack.c.l.b16 %v1008
        %v1390 = vunpack.c.h.b16 %v1008
        %v1391 = vunpack.c.l.b16 %v1009
        %v1392 = vunpack.c.h.b16 %v1009
        %v1393 = vunpack.c.l.b16 %v1010
        %v1394 = vunpack.c.h.b16 %v1010
        %v1395 = vunpack.c.l.b16 %v1011
        %v1396 = vunpack.c.h.b16 %v1011
        %v1397 = vunpack.c.l.b16 %v1012
        %v1398 = vunpack.c.h.b16 %v1012
        %v1399 = vunpack.c.l.b16 %v1013
        %v1400 = vunpack.c.h.b16 %v1013
        %v1401 = vunpack.c.l.b16 %v1014
        %v1402 = vunpack.c.h.b16 %v1014
        %v1403 = vunpack.c.l.b16 %v1015
        %v1404 = vunpack.c.h.b16 %v1015
        %v1405 = vunpack.c.l.b16 %v1016
        %v1406 = vunpack.c.h.b16 %v1016
        %v1407 = vunpack.c.l.b16 %v1017
        %v1408 = vunpack.c.h.b16 %v1017
        %v1409 = vunpack.c.l.b16 %v1018
        %v1410 = vunpack.c.h.b16 %v1018
        %v1411 = vunpack.c.l.b16 %v1019
        %v1412 = vunpack.c.h.b16 %v1019
        %v1413 = vunpack.c.l.b16 %v1020
        %v1414 = vunpack.c.h.b16 %v1020
        %v1415 = vunpack.c.l.b16 %v1021
        %v1416 = vunpack.c.h.b16 %v1021
        %v1417 = vunpack.c.l.b16 %v1022
        %v1418 = vunpack.c.h.b16 %v1022
        %v1419 = vunpack.c.l.b16 %v1023
        %v1420 = vunpack.c.h.b16 %v1023
        %v1421 = vunpack.c.l.b16 %v1024
        %v1422 = vunpack.c.h.b16 %v1024
        %v1423 = vunpack.c.l.b16 %v1025
        %v1424 = vunpack.c.h.b16 %v1025
        %v1425 = vunpack.c.l.b16 %v1026
        %v1426 = vunpack.c.h.b16 %v1026
        %v1427 = vunpack.c.l.b16 %v1027
        %v1428 = vunpack.c.h.b16 %v1027
        %v1429 = vunpack.c.l.b16 %v1028
        %v1430 = vunpack.c.h.b16 %v1028
        %v1431 = vunpack.c.l.b16 %v1029
        %v1432 = vunpack.c.h.b16 %v1029
        %v1433 = vunpack.c.l.b16 %v1030
        %v1434 = vunpack.c.h.b16 %v1030
        %v1435 = vunpack.c.l.b16 %v1031
        %v1436 = vunpack.c.h.b16 %v1031
        %v1437 = vunpack.c.l.b16 %v1032
        %v1438 = vunpack.c.h.b16 %v1032
        %v1439 = vpack.c.b16 %v1187, %v1183
        %v1440 = vpack.c.b16 %v1188, %v1184
        %v1441 = vpack.c.b16 %v1189, %v1185
        %v1442 = vpack.c.b16 %v1190, %v1186
        %v1443 = vpack.c.b16 %v1195, %v1191
        %v1444 = vpack.c.b16 %v1196, %v1192
        %v1445 = vpack.c.b16 %v1197, %v1193
        %v1446 = vpack.c.b16 %v1198, %v1194
        %v1447 = vpack.c.b16 %v1203, %v1199
        %v1448 = vpack.c.b16 %v1204, %v1200
        %v1449 = vpack.c.b16 %v1205, %v1201
        %v1450 = vpack.c.b16 %v1206, %v1202
        %v1451 = vpack.c.b16 %v1211, %v1207
        %v1452 = vpack.c.b16 %v1212, %v1208
        %v1453 = vpack.c.b16 %v1213, %v1209
        %v1454 = vpack.c.b16 %v1214, %v1210
        %v1455 = vpack.c.b16 %v1219, %v1215
        %v1456 = vpack.c.b16 %v1220, %v1216
        %v1457 = vpack.c.b16 %v1221, %v1217
        %v1458 = vpack.c.b16 %v1222, %v1218
        %v1459 = vpack.c.b16 %v1227, %v1223
        %v1460 = vpack.c.b16 %v1228, %v1224
        %v1461 = vpack.c.b16 %v1229, %v1225
        %v1462 = vpack.c.b16 %v1230, %v1226
        %v1463 = vpack.c.b16 %v1235, %v1231
        %v1464 = vpack.c.b16 %v1236, %v1232
        %v1465 = vpack.c.b16 %v1237, %v1233
        %v1466 = vpack.c.b16 %v1238, %v1234
        %v1467 = vpack.c.b16 %v1243, %v1239
        %v1468 = vpack.c.b16 %v1244, %v1240
        %v1469 = vpack.c.b16 %v1245, %v1241
        %v1470 = vpack.c.b16 %v1246, %v1242
        %v1471 = vpack.c.b16 %v1251, %v1247
        %v1472 = vpack.c.b16 %v1252, %v1248
        %v1473 = vpack.c.b16 %v1253, %v1249
        %v1474 = vpack.c.b16 %v1254, %v1250
        %v1475 = vpack.c.b16 %v1259, %v1255
        %v1476 = vpack.c.b16 %v1260, %v1256
        %v1477 = vpack.c.b16 %v1261, %v1257
        %v1478 = vpack.c.b16 %v1262, %v1258
        %v1479 = vpack.c.b16 %v1267, %v1263
        %v1480 = vpack.c.b16 %v1268, %v1264
        %v1481 = vpack.c.b16 %v1269, %v1265
        %v1482 = vpack.c.b16 %v1270, %v1266
        %v1483 = vpack.c.b16 %v1275, %v1271
        %v1484 = vpack.c.b16 %v1276, %v1272
        %v1485 = vpack.c.b16 %v1277, %v1273
        %v1486 = vpack.c.b16 %v1278, %v1274
        %v1487 = vpack.c.b16 %v1283, %v1279
        %v1488 = vpack.c.b16 %v1284, %v1280
        %v1489 = vpack.c.b16 %v1285, %v1281
        %v1490 = vpack.c.b16 %v1286, %v1282
        %v1491 = vpack.c.b16 %v1291, %v1287
        %v1492 = vpack.c.b16 %v1292, %v1288
        %v1493 = vpack.c.b16 %v1293, %v1289
        %v1494 = vpack.c.b16 %v1294, %v1290
        %v1495 = vpack.c.b16 %v1299, %v1295
        %v1496 = vpack.c.b16 %v1300, %v1296
        %v1497 = vpack.c.b16 %v1301, %v1297
        %v1498 = vpack.c.b16 %v1302, %v1298
        %v1499 = vpack.c.b16 %v1307, %v1303
        %v1500 = vpack.c.b16 %v1308, %v1304
        %v1501 = vpack.c.b16 %v1309, %v1305
        %v1502 = vpack.c.b16 %v1310, %v1306
        %v1503 = vpack.c.b16 %v1315, %v1311
        %v1504 = vpack.c.b16 %v1316, %v1312
        %v1505 = vpack.c.b16 %v1317, %v1313
        %v1506 = vpack.c.b16 %v1318, %v1314
        %v1507 = vpack.c.b16 %v1323, %v1319
        %v1508 = vpack.c.b16 %v1324, %v1320
        %v1509 = vpack.c.b16 %v1325, %v1321
        %v1510 = vpack.c.b16 %v1326, %v1322
        %v1511 = vpack.c.b16 %v1331, %v1327
        %v1512 = vpack.c.b16 %v1332, %v1328
        %v1513 = vpack.c.b16 %v1333, %v1329
        %v1514 = vpack.c.b16 %v1334, %v1330
        %v1515 = vpack.c.b16 %v1339, %v1335
        %v1516 = vpack.c.b16 %v1340, %v1336
        %v1517 = vpack.c.b16 %v1341, %v1337
        %v1518 = vpack.c.b16 %v1342, %v1338
        %v1519 = vpack.c.b16 %v1347, %v1343
        %v1520 = vpack.c.b16 %v1348, %v1344
        %v1521 = vpack.c.b16 %v1349, %v1345
        %v1522 = vpack.c.b16 %v1350, %v1346
        %v1523 = vpack.c.b16 %v1355, %v1351
        %v1524 = vpack.c.b16 %v1356, %v1352
        %v1525 = vpack.c.b16 %v1357, %v1353
        %v1526 = vpack.c.b16 %v1358, %v1354
        %v1527 = vpack.c.b16 %v1363, %v1359
        %v1528 = vpack.c.b16 %v1364, %v1360
        %v1529 = vpack.c.b16 %v1365, %v1361
        %v1530 = vpack.c.b16 %v1366, %v1362
        %v1531 = vpack.c.b16 %v1371, %v1367
        %v1532 = vpack.c.b16 %v1372, %v1368
        %v1533 = vpack.c.b16 %v1373, %v1369
        %v1534 = vpack.c.b16 %v1374, %v1370
        %v1535 = vpack.c.b16 %v1379, %v1375
        %v1536 = vpack.c.b16 %v1380, %v1376
        %v1537 = vpack.c.b16 %v1381, %v1377
        %v1538 = vpack.c.b16 %v1382, %v1378
        %v1539 = vpack.c.b16 %v1387, %v1383
        %v1540 = vpack.c.b16 %v1388, %v1384
        %v1541 = vpack.c.b16 %v1389, %v1385
        %v1542 = vpack.c.b16 %v1390, %v1386
        %v1543 = vpack.c.b16 %v1395, %v1391
        %v1544 = vpack.c.b16 %v1396, %v1392
        %v1545 = vpack.c.b16 %v1397, %v1393
        %v1546 = vpack.c.b16 %v1398, %v1394
        %v1547 = vpack.c.b16 %v1403, %v1399
        %v1548 = vpack.c.b16 %v1404, %v1400
        %v1549 = vpack.c.b16 %v1405, %v1401
        %v1550 = vpack.c.b16 %v1406, %v1402
        %v1551 = vpack.c.b16 %v1411, %v1407
        %v1552 = vpack.c.b16 %v1412, %v1408
        %v1553 = vpack.c.b16 %v1413, %v1409
        %v1554 = vpack.c.b16 %v1414, %v1410
        %v1555 = vpack.c.b16 %v1419, %v1415
        %v1556 = vpack.c.b16 %v1420, %v1416
        %v1557 = vpack.c.b16 %v1421, %v1417
        %v1558 = vpack.c.b16 %v1422, %v1418
        %v1559 = vpack.c.b16 %v1427, %v1423
        %v1560 = vpack.c.b16 %v1428, %v1424
        %v1561 = vpack.c.b16 %v1429, %v1425
        %v1562 = vpack.c.b16 %v1430, %v1426
        %v1563 = vpack.c.b16 %v1435, %v1431
        %v1564 = vpack.c.b16 %v1436, %v1432
        %v1565 = vpack.c.b16 %v1437, %v1433
        %v1566 = vpack.c.b16 %v1438, %v1434
        %1695 = vmatprep.subr.bf16.mxu0 %v1440
        %1696 = vmatpush1.bf16.msra.mxu0 %v1439
        %1697 = vmatprep.subr.bf16.mxu0 %v1444
        %1698 = vmatpush1.bf16.msra.mxu0 %v1443
        %1699 = vmatprep.subr.bf16.mxu0 %v1448
        %1700 = vmatpush1.bf16.msra.mxu0 %v1447
        %1701 = vmatprep.subr.bf16.mxu0 %v1452
        %1702 = vmatpush1.bf16.msra.mxu0 %v1451
        %1703 = vmatprep.subr.bf16.mxu0 %v1456
        %1704 = vmatpush1.bf16.msra.mxu0 %v1455
        %1705 = vmatprep.subr.bf16.mxu0 %v1460
        %1706 = vmatpush1.bf16.msra.mxu0 %v1459
        %1707 = vmatprep.subr.bf16.mxu0 %v1464
        %1708 = vmatpush1.bf16.msra.mxu0 %v1463
        %1709 = vmatprep.subr.bf16.mxu0 %v1468
        %1710 = vmatpush1.bf16.msra.mxu0 %v1467
        %1711 = vmatprep.subr.bf16.mxu0 %v1472
        %1712 = vmatpush1.bf16.msra.mxu0 %v1471
        %1713 = vmatprep.subr.bf16.mxu0 %v1476
        %1714 = vmatpush1.bf16.msra.mxu0 %v1475
        %1715 = vmatprep.subr.bf16.mxu0 %v1480
        %1716 = vmatpush1.bf16.msra.mxu0 %v1479
        %1717 = vmatprep.subr.bf16.mxu0 %v1484
        %1718 = vmatpush1.bf16.msra.mxu0 %v1483
        %1719 = vmatprep.subr.bf16.mxu0 %v1488
        %1720 = vmatpush1.bf16.msra.mxu0 %v1487
        %1721 = vmatprep.subr.bf16.mxu0 %v1492
        %1722 = vmatpush1.bf16.msra.mxu0 %v1491
        %1723 = vmatprep.subr.bf16.mxu0 %v1496
        %1724 = vmatpush1.bf16.msra.mxu0 %v1495
        %1725 = vmatprep.subr.bf16.mxu0 %v1500
        %1726 = vmatpush1.bf16.msra.mxu0 %v1499
        %1727 = vmatprep.mubr.bf16.mxu0 %v902
        %1728 = vmatmul.mubr.bf16.gmra.mrb[0].mxu0 %v901
        %v1729 = vpop.f32.mrb[0].mxu0
        %v1730 = vadd.f32 %v1038, %v1729
        %v1731 = vpop.f32.mrb[0].mxu0
        %v1732 = vadd.f32 %v1042, %v1731
        %v1733 = vpop.f32.mrb[0].mxu0
        %v1734 = vadd.f32 %v1038, %v1733
        %v1735 = vpop.f32.mrb[0].mxu0
        %v1736 = vadd.f32 %v1042, %v1735
        %1737 = vdwg.mxu0
        %1738 = vmatprep.subr.bf16.mxu0 %v1504
        %1739 = vmatpush1.bf16.msra.mxu0 %v1503
        %1740 = vmatprep.subr.bf16.mxu0 %v1508
        %1741 = vmatpush1.bf16.msra.mxu0 %v1507
        %1742 = vmatprep.subr.bf16.mxu0 %v1512
        %1743 = vmatpush1.bf16.msra.mxu0 %v1511
        %1744 = vmatprep.subr.bf16.mxu0 %v1516
        %1745 = vmatpush1.bf16.msra.mxu0 %v1515
        %1746 = vmatprep.subr.bf16.mxu0 %v1520
        %1747 = vmatpush1.bf16.msra.mxu0 %v1519
        %1748 = vmatprep.subr.bf16.mxu0 %v1524
        %1749 = vmatpush1.bf16.msra.mxu0 %v1523
        %1750 = vmatprep.subr.bf16.mxu0 %v1528
        %1751 = vmatpush1.bf16.msra.mxu0 %v1527
        %1752 = vmatprep.subr.bf16.mxu0 %v1532
        %1753 = vmatpush1.bf16.msra.mxu0 %v1531
        %1754 = vmatprep.subr.bf16.mxu0 %v1536
        %1755 = vmatpush1.bf16.msra.mxu0 %v1535
        %1756 = vmatprep.subr.bf16.mxu0 %v1540
        %1757 = vmatpush1.bf16.msra.mxu0 %v1539
        %1758 = vmatprep.subr.bf16.mxu0 %v1544
        %1759 = vmatpush1.bf16.msra.mxu0 %v1543
        %1760 = vmatprep.subr.bf16.mxu0 %v1548
        %1761 = vmatpush1.bf16.msra.mxu0 %v1547
        %1762 = vmatprep.subr.bf16.mxu0 %v1552
        %1763 = vmatpush1.bf16.msra.mxu0 %v1551
        %1764 = vmatprep.subr.bf16.mxu0 %v1556
        %1765 = vmatpush1.bf16.msra.mxu0 %v1555
        %1766 = vmatprep.subr.bf16.mxu0 %v1560
        %1767 = vmatpush1.bf16.msra.mxu0 %v1559
        %1768 = vmatprep.subr.bf16.mxu0 %v1564
        %1769 = vmatpush1.bf16.msra.mxu0 %v1563
        %1770 = vmatprep.mubr.bf16.mxu0 %v904
        %1771 = vmatmul.mubr.bf16.gmra.mrb[0].mxu0 %v903
        %v1772 = vpop.f32.mrb[0].mxu0
        %v1773 = vadd.f32 %v1730, %v1772
        %v1774 = vpop.f32.mrb[0].mxu0
        %v1775 = vadd.f32 %v1732, %v1774
        %v1776 = vpop.f32.mrb[0].mxu0
        %v1777 = vadd.f32 %v1734, %v1776
        %v1778 = vpop.f32.mrb[0].mxu0
        %v1779 = vadd.f32 %v1736, %v1778
        %1780 = vdwg.mxu0
        %1781 = vmatprep.subr.bf16.mxu0 %v1442
        %1782 = vmatpush1.bf16.msra.mxu0 %v1441
        %1783 = vmatprep.subr.bf16.mxu0 %v1446
        %1784 = vmatpush1.bf16.msra.mxu0 %v1445
        %1785 = vmatprep.subr.bf16.mxu0 %v1450
        %1786 = vmatpush1.bf16.msra.mxu0 %v1449
        %1787 = vmatprep.subr.bf16.mxu0 %v1454
        %1788 = vmatpush1.bf16.msra.mxu0 %v1453
        %1789 = vmatprep.subr.bf16.mxu0 %v1458
        %1790 = vmatpush1.bf16.msra.mxu0 %v1457
        %1791 = vmatprep.subr.bf16.mxu0 %v1462
        %1792 = vmatpush1.bf16.msra.mxu0 %v1461
        %1793 = vmatprep.subr.bf16.mxu0 %v1466
        %1794 = vmatpush1.bf16.msra.mxu0 %v1465
        %1795 = vmatprep.subr.bf16.mxu0 %v1470
        %1796 = vmatpush1.bf16.msra.mxu0 %v1469
        %1797 = vmatprep.subr.bf16.mxu0 %v1474
        %1798 = vmatpush1.bf16.msra.mxu0 %v1473
        %1799 = vmatprep.subr.bf16.mxu0 %v1478
        %1800 = vmatpush1.bf16.msra.mxu0 %v1477
        %1801 = vmatprep.subr.bf16.mxu0 %v1482
        %1802 = vmatpush1.bf16.msra.mxu0 %v1481
        %1803 = vmatprep.subr.bf16.mxu0 %v1486
        %1804 = vmatpush1.bf16.msra.mxu0 %v1485
        %1805 = vmatprep.subr.bf16.mxu0 %v1490
        %1806 = vmatpush1.bf16.msra.mxu0 %v1489
        %1807 = vmatprep.subr.bf16.mxu0 %v1494
        %1808 = vmatpush1.bf16.msra.mxu0 %v1493
        %1809 = vmatprep.subr.bf16.mxu0 %v1498
        %1810 = vmatpush1.bf16.msra.mxu0 %v1497
        %1811 = vmatprep.subr.bf16.mxu0 %v1502
        %1812 = vmatpush1.bf16.msra.mxu0 %v1501
        %1813 = vmatprep.mubr.bf16.mxu0 %v902
        %1814 = vmatmul.mubr.bf16.gmra.mrb[0].mxu0 %v901
        %v1815 = vpop.f32.mrb[0].mxu0
        %v1816 = vadd.f32 %v1046, %v1815
        %v1817 = vpop.f32.mrb[0].mxu0
        %v1818 = vadd.f32 %v1050, %v1817
        %v1819 = vpop.f32.mrb[0].mxu0
        %v1820 = vadd.f32 %v1046, %v1819
        %v1821 = vpop.f32.mrb[0].mxu0
        %v1822 = vadd.f32 %v1050, %v1821
        %1823 = vdwg.mxu0
        %1824 = vmatprep.subr.bf16.mxu0 %v1506
        %1825 = vmatpush1.bf16.msra.mxu0 %v1505
        %1826 = vmatprep.subr.bf16.mxu0 %v1510
        %1827 = vmatpush1.bf16.msra.mxu0 %v1509
        %1828 = vmatprep.subr.bf16.mxu0 %v1514
        %1829 = vmatpush1.bf16.msra.mxu0 %v1513
        %1830 = vmatprep.subr.bf16.mxu0 %v1518
        %1831 = vmatpush1.bf16.msra.mxu0 %v1517
        %1832 = vmatprep.subr.bf16.mxu0 %v1522
        %1833 = vmatpush1.bf16.msra.mxu0 %v1521
        %1834 = vmatprep.subr.bf16.mxu0 %v1526
        %1835 = vmatpush1.bf16.msra.mxu0 %v1525
        %1836 = vmatprep.subr.bf16.mxu0 %v1530
        %1837 = vmatpush1.bf16.msra.mxu0 %v1529
        %1838 = vmatprep.subr.bf16.mxu0 %v1534
        %1839 = vmatpush1.bf16.msra.mxu0 %v1533
        %1840 = vmatprep.subr.bf16.mxu0 %v1538
        %1841 = vmatpush1.bf16.msra.mxu0 %v1537
        %1842 = vmatprep.subr.bf16.mxu0 %v1542
        %1843 = vmatpush1.bf16.msra.mxu0 %v1541
        %1844 = vmatprep.subr.bf16.mxu0 %v1546
        %1845 = vmatpush1.bf16.msra.mxu0 %v1545
        %1846 = vmatprep.subr.bf16.mxu0 %v1550
        %1847 = vmatpush1.bf16.msra.mxu0 %v1549
        %1848 = vmatprep.subr.bf16.mxu0 %v1554
        %1849 = vmatpush1.bf16.msra.mxu0 %v1553
        %1850 = vmatprep.subr.bf16.mxu0 %v1558
        %1851 = vmatpush1.bf16.msra.mxu0 %v1557
        %1852 = vmatprep.subr.bf16.mxu0 %v1562
        %1853 = vmatpush1.bf16.msra.mxu0 %v1561
        %1854 = vmatprep.subr.bf16.mxu0 %v1566
        %1855 = vmatpush1.bf16.msra.mxu0 %v1565
        %1856 = vmatprep.mubr.bf16.mxu0 %v904
        %1857 = vmatmul.mubr.bf16.gmra.mrb[0].mxu0 %v903
        %v1858 = vpop.f32.mrb[0].mxu0
        %v1859 = vadd.f32 %v1816, %v1858
        %v1860 = vpop.f32.mrb[0].mxu0
        %v1861 = vadd.f32 %v1818, %v1860
        %v1862 = vpop.f32.mrb[0].mxu0
        %v1863 = vadd.f32 %v1820, %v1862
        %v1864 = vpop.f32.mrb[0].mxu0
        %v1865 = vadd.f32 %v1822, %v1864
        %1866 = vdwg.mxu0
        %v1867 = vmax.f32 %v1773, 0.0
        %v1868 = vmax.f32 %v1775, 0.0
        %v1869 = vmax.f32 %v1859, 0.0
        %v1870 = vmax.f32 %v1861, 0.0
        %v1871 = vmax.f32 %v1777, 0.0
        %v1872 = vmax.f32 %v1779, 0.0
        %v1873 = vmax.f32 %v1863, 0.0
        %v1874 = vmax.f32 %v1865, 0.0
        %v1875 = vpack.c.bf16 %v1871, %v1867
        %v1876 = vpack.c.bf16 %v1872, %v1868
        %v1877 = vpack.c.bf16 %v1873, %v1869
        %v1878 = vpack.c.bf16 %v1874, %v1870
        %v1879 = vld [vmem:[#allocation8] sm:$0xff]
        %v1880 = vld [vmem:[#allocation8 + $0x8] sm:$0xff]
        %v1881 = vld [vmem:[#allocation8 + $0x10] sm:$0xff]
        %v1882 = vld [vmem:[#allocation8 + $0x18] sm:$0xff]
        %v1883 = vld [vmem:[#allocation8 + $0x20] sm:$0xff]
        %v1884 = vld [vmem:[#allocation8 + $0x28] sm:$0xff]
        %v1885 = vld [vmem:[#allocation8 + $0x30] sm:$0xff]
        %v1886 = vld [vmem:[#allocation8 + $0x38] sm:$0xff]
        %v1887 = vld [vmem:[#allocation8 + $0x40] sm:$0xff]
        %v1888 = vld [vmem:[#allocation8 + $0x48] sm:$0xff]
        %v1889 = vld [vmem:[#allocation8 + $0x50] sm:$0xff]
        %v1890 = vld [vmem:[#allocation8 + $0x58] sm:$0xff]
        %v1891 = vld [vmem:[#allocation8 + $0x60] sm:$0xff]
        %v1892 = vld [vmem:[#allocation8 + $0x68] sm:$0xff]
        %v1893 = vld [vmem:[#allocation8 + $0x70] sm:$0xff]
        %v1894 = vld [vmem:[#allocation8 + $0x78] sm:$0xff]
        %v1895 = vld [vmem:[#allocation8 + $0x80] sm:$0xff]
        %v1896 = vld [vmem:[#allocation8 + $0x88] sm:$0xff]
        %v1897 = vld [vmem:[#allocation8 + $0x90] sm:$0xff]
        %v1898 = vld [vmem:[#allocation8 + $0x98] sm:$0xff]
        %v1899 = vld [vmem:[#allocation8 + $0xa0] sm:$0xff]
        %v1900 = vld [vmem:[#allocation8 + $0xa8] sm:$0xff]
        %v1901 = vld [vmem:[#allocation8 + $0xb0] sm:$0xff]
        %v1902 = vld [vmem:[#allocation8 + $0xb8] sm:$0xff]
        %v1903 = vld [vmem:[#allocation8 + $0xc0] sm:$0xff]
        %v1904 = vld [vmem:[#allocation8 + $0xc8] sm:$0xff]
        %v1905 = vld [vmem:[#allocation8 + $0xd0] sm:$0xff]
        %v1906 = vld [vmem:[#allocation8 + $0xd8] sm:$0xff]
        %v1907 = vld [vmem:[#allocation8 + $0xe0] sm:$0xff]
        %v1908 = vld [vmem:[#allocation8 + $0xe8] sm:$0xff]
        %v1909 = vld [vmem:[#allocation8 + $0xf0] sm:$0xff]
        %v1910 = vld [vmem:[#allocation8 + $0xf8] sm:$0xff]
        %v1911 = vld [vmem:[#allocation8 + $0x100] sm:$0xff]
        %v1912 = vld [vmem:[#allocation8 + $0x108] sm:$0xff]
        %v1913 = vld [vmem:[#allocation8 + $0x110] sm:$0xff]
        %v1914 = vld [vmem:[#allocation8 + $0x118] sm:$0xff]
        %v1915 = vld [vmem:[#allocation8 + $0x120] sm:$0xff]
        %v1916 = vld [vmem:[#allocation8 + $0x128] sm:$0xff]
        %v1917 = vld [vmem:[#allocation8 + $0x130] sm:$0xff]
        %v1918 = vld [vmem:[#allocation8 + $0x138] sm:$0xff]
        %v1919 = vld [vmem:[#allocation8 + $0x140] sm:$0xff]
        %v1920 = vld [vmem:[#allocation8 + $0x148] sm:$0xff]
        %v1921 = vld [vmem:[#allocation8 + $0x150] sm:$0xff]
        %v1922 = vld [vmem:[#allocation8 + $0x158] sm:$0xff]
        %v1923 = vld [vmem:[#allocation8 + $0x160] sm:$0xff]
        %v1924 = vld [vmem:[#allocation8 + $0x168] sm:$0xff]
        %v1925 = vld [vmem:[#allocation8 + $0x170] sm:$0xff]
        %v1926 = vld [vmem:[#allocation8 + $0x178] sm:$0xff]
        %v1927 = vld [vmem:[#allocation8 + $0x180] sm:$0xff]
        %v1928 = vld [vmem:[#allocation8 + $0x188] sm:$0xff]
        %v1929 = vld [vmem:[#allocation8 + $0x190] sm:$0xff]
        %v1930 = vld [vmem:[#allocation8 + $0x198] sm:$0xff]
        %v1931 = vld [vmem:[#allocation8 + $0x1a0] sm:$0xff]
        %v1932 = vld [vmem:[#allocation8 + $0x1a8] sm:$0xff]
        %v1933 = vld [vmem:[#allocation8 + $0x1b0] sm:$0xff]
        %v1934 = vld [vmem:[#allocation8 + $0x1b8] sm:$0xff]
        %v1935 = vld [vmem:[#allocation8 + $0x1c0] sm:$0xff]
        %v1936 = vld [vmem:[#allocation8 + $0x1c8] sm:$0xff]
        %v1937 = vld [vmem:[#allocation8 + $0x1d0] sm:$0xff]
        %v1938 = vld [vmem:[#allocation8 + $0x1d8] sm:$0xff]
        %v1939 = vld [vmem:[#allocation8 + $0x1e0] sm:$0xff]
        %v1940 = vld [vmem:[#allocation8 + $0x1e8] sm:$0xff]
        %v1941 = vld [vmem:[#allocation8 + $0x1f0] sm:$0xff]
        %v1942 = vld [vmem:[#allocation8 + $0x1f8] sm:$0xff]
        %v1943 = vld [vmem:[%s6] sm:$0x3]
        %v1945 = vlaneseq
        %v1946 = vshrl.u32 %v1945, 7
        %v1947 = vsub.s32 0, %v1946
        %v1948 = vrot.slane %v1943, %v1947
        %v1949 = vlaneseq
        %v1950 = vshrl.u32 %v1949, 7
        %v1951 = vsub.s32 1, %v1950
        %v1952 = vrot.slane %v1943, %v1951
        %v2019 = vunpack.c.l.b16 %v1879
        %v2020 = vunpack.c.h.b16 %v1879
        %v2021 = vunpack.c.l.b16 %v1880
        %v2022 = vunpack.c.h.b16 %v1880
        %v2023 = vunpack.c.l.b16 %v1881
        %v2024 = vunpack.c.h.b16 %v1881
        %v2025 = vunpack.c.l.b16 %v1882
        %v2026 = vunpack.c.h.b16 %v1882
        %v2027 = vunpack.c.l.b16 %v1883
        %v2028 = vunpack.c.h.b16 %v1883
        %v2029 = vunpack.c.l.b16 %v1884
        %v2030 = vunpack.c.h.b16 %v1884
        %v2031 = vunpack.c.l.b16 %v1885
        %v2032 = vunpack.c.h.b16 %v1885
        %v2033 = vunpack.c.l.b16 %v1886
        %v2034 = vunpack.c.h.b16 %v1886
        %v2035 = vunpack.c.l.b16 %v1887
        %v2036 = vunpack.c.h.b16 %v1887
        %v2037 = vunpack.c.l.b16 %v1888
        %v2038 = vunpack.c.h.b16 %v1888
        %v2039 = vunpack.c.l.b16 %v1889
        %v2040 = vunpack.c.h.b16 %v1889
        %v2041 = vunpack.c.l.b16 %v1890
        %v2042 = vunpack.c.h.b16 %v1890
        %v2043 = vunpack.c.l.b16 %v1891
        %v2044 = vunpack.c.h.b16 %v1891
        %v2045 = vunpack.c.l.b16 %v1892
        %v2046 = vunpack.c.h.b16 %v1892
        %v2047 = vunpack.c.l.b16 %v1893
        %v2048 = vunpack.c.h.b16 %v1893
        %v2049 = vunpack.c.l.b16 %v1894
        %v2050 = vunpack.c.h.b16 %v1894
        %v2051 = vunpack.c.l.b16 %v1895
        %v2052 = vunpack.c.h.b16 %v1895
        %v2053 = vunpack.c.l.b16 %v1896
        %v2054 = vunpack.c.h.b16 %v1896
        %v2055 = vunpack.c.l.b16 %v1897
        %v2056 = vunpack.c.h.b16 %v1897
        %v2057 = vunpack.c.l.b16 %v1898
        %v2058 = vunpack.c.h.b16 %v1898
        %v2059 = vunpack.c.l.b16 %v1899
        %v2060 = vunpack.c.h.b16 %v1899
        %v2061 = vunpack.c.l.b16 %v1900
        %v2062 = vunpack.c.h.b16 %v1900
        %v2063 = vunpack.c.l.b16 %v1901
        %v2064 = vunpack.c.h.b16 %v1901
        %v2065 = vunpack.c.l.b16 %v1902
        %v2066 = vunpack.c.h.b16 %v1902
        %v2067 = vunpack.c.l.b16 %v1903
        %v2068 = vunpack.c.h.b16 %v1903
        %v2069 = vunpack.c.l.b16 %v1904
        %v2070 = vunpack.c.h.b16 %v1904
        %v2071 = vunpack.c.l.b16 %v1905
        %v2072 = vunpack.c.h.b16 %v1905
        %v2073 = vunpack.c.l.b16 %v1906
        %v2074 = vunpack.c.h.b16 %v1906
        %v2075 = vunpack.c.l.b16 %v1907
        %v2076 = vunpack.c.h.b16 %v1907
        %v2077 = vunpack.c.l.b16 %v1908
        %v2078 = vunpack.c.h.b16 %v1908
        %v2079 = vunpack.c.l.b16 %v1909
        %v2080 = vunpack.c.h.b16 %v1909
        %v2081 = vunpack.c.l.b16 %v1910
        %v2082 = vunpack.c.h.b16 %v1910
        %v2083 = vunpack.c.l.b16 %v1911
        %v2084 = vunpack.c.h.b16 %v1911
        %v2085 = vunpack.c.l.b16 %v1912
        %v2086 = vunpack.c.h.b16 %v1912
        %v2087 = vunpack.c.l.b16 %v1913
        %v2088 = vunpack.c.h.b16 %v1913
        %v2089 = vunpack.c.l.b16 %v1914
        %v2090 = vunpack.c.h.b16 %v1914
        %v2091 = vunpack.c.l.b16 %v1915
        %v2092 = vunpack.c.h.b16 %v1915
        %v2093 = vunpack.c.l.b16 %v1916
        %v2094 = vunpack.c.h.b16 %v1916
        %v2095 = vunpack.c.l.b16 %v1917
        %v2096 = vunpack.c.h.b16 %v1917
        %v2097 = vunpack.c.l.b16 %v1918
        %v2098 = vunpack.c.h.b16 %v1918
        %v2099 = vunpack.c.l.b16 %v1919
        %v2100 = vunpack.c.h.b16 %v1919
        %v2101 = vunpack.c.l.b16 %v1920
        %v2102 = vunpack.c.h.b16 %v1920
        %v2103 = vunpack.c.l.b16 %v1921
        %v2104 = vunpack.c.h.b16 %v1921
        %v2105 = vunpack.c.l.b16 %v1922
        %v2106 = vunpack.c.h.b16 %v1922
        %v2107 = vunpack.c.l.b16 %v1923
        %v2108 = vunpack.c.h.b16 %v1923
        %v2109 = vunpack.c.l.b16 %v1924
        %v2110 = vunpack.c.h.b16 %v1924
        %v2111 = vunpack.c.l.b16 %v1925
        %v2112 = vunpack.c.h.b16 %v1925
        %v2113 = vunpack.c.l.b16 %v1926
        %v2114 = vunpack.c.h.b16 %v1926
        %v2115 = vunpack.c.l.b16 %v1927
        %v2116 = vunpack.c.h.b16 %v1927
        %v2117 = vunpack.c.l.b16 %v1928
        %v2118 = vunpack.c.h.b16 %v1928
        %v2119 = vunpack.c.l.b16 %v1929
        %v2120 = vunpack.c.h.b16 %v1929
        %v2121 = vunpack.c.l.b16 %v1930
        %v2122 = vunpack.c.h.b16 %v1930
        %v2123 = vunpack.c.l.b16 %v1931
        %v2124 = vunpack.c.h.b16 %v1931
        %v2125 = vunpack.c.l.b16 %v1932
        %v2126 = vunpack.c.h.b16 %v1932
        %v2127 = vunpack.c.l.b16 %v1933
        %v2128 = vunpack.c.h.b16 %v1933
        %v2129 = vunpack.c.l.b16 %v1934
        %v2130 = vunpack.c.h.b16 %v1934
        %v2131 = vunpack.c.l.b16 %v1935
        %v2132 = vunpack.c.h.b16 %v1935
        %v2133 = vunpack.c.l.b16 %v1936
        %v2134 = vunpack.c.h.b16 %v1936
        %v2135 = vunpack.c.l.b16 %v1937
        %v2136 = vunpack.c.h.b16 %v1937
        %v2137 = vunpack.c.l.b16 %v1938
        %v2138 = vunpack.c.h.b16 %v1938
        %v2139 = vunpack.c.l.b16 %v1939
        %v2140 = vunpack.c.h.b16 %v1939
        %v2141 = vunpack.c.l.b16 %v1940
        %v2142 = vunpack.c.h.b16 %v1940
        %v2143 = vunpack.c.l.b16 %v1941
        %v2144 = vunpack.c.h.b16 %v1941
        %v2145 = vunpack.c.l.b16 %v1942
        %v2146 = vunpack.c.h.b16 %v1942
        %v2147 = vpack.c.b16 %v2021, %v2019
        %v2148 = vpack.c.b16 %v2022, %v2020
        %v2149 = vpack.c.b16 %v2025, %v2023
        %v2150 = vpack.c.b16 %v2026, %v2024
        %v2151 = vpack.c.b16 %v2029, %v2027
        %v2152 = vpack.c.b16 %v2030, %v2028
        %v2153 = vpack.c.b16 %v2033, %v2031
        %v2154 = vpack.c.b16 %v2034, %v2032
        %v2155 = vpack.c.b16 %v2037, %v2035
        %v2156 = vpack.c.b16 %v2038, %v2036
        %v2157 = vpack.c.b16 %v2041, %v2039
        %v2158 = vpack.c.b16 %v2042, %v2040
        %v2159 = vpack.c.b16 %v2045, %v2043
        %v2160 = vpack.c.b16 %v2046, %v2044
        %v2161 = vpack.c.b16 %v2049, %v2047
        %v2162 = vpack.c.b16 %v2050, %v2048
        %v2163 = vpack.c.b16 %v2053, %v2051
        %v2164 = vpack.c.b16 %v2054, %v2052
        %v2165 = vpack.c.b16 %v2057, %v2055
        %v2166 = vpack.c.b16 %v2058, %v2056
        %v2167 = vpack.c.b16 %v2061, %v2059
        %v2168 = vpack.c.b16 %v2062, %v2060
        %v2169 = vpack.c.b16 %v2065, %v2063
        %v2170 = vpack.c.b16 %v2066, %v2064
        %v2171 = vpack.c.b16 %v2069, %v2067
        %v2172 = vpack.c.b16 %v2070, %v2068
        %v2173 = vpack.c.b16 %v2073, %v2071
        %v2174 = vpack.c.b16 %v2074, %v2072
        %v2175 = vpack.c.b16 %v2077, %v2075
        %v2176 = vpack.c.b16 %v2078, %v2076
        %v2177 = vpack.c.b16 %v2081, %v2079
        %v2178 = vpack.c.b16 %v2082, %v2080
        %v2179 = vpack.c.b16 %v2085, %v2083
        %v2180 = vpack.c.b16 %v2086, %v2084
        %v2181 = vpack.c.b16 %v2089, %v2087
        %v2182 = vpack.c.b16 %v2090, %v2088
        %v2183 = vpack.c.b16 %v2093, %v2091
        %v2184 = vpack.c.b16 %v2094, %v2092
        %v2185 = vpack.c.b16 %v2097, %v2095
        %v2186 = vpack.c.b16 %v2098, %v2096
        %v2187 = vpack.c.b16 %v2101, %v2099
        %v2188 = vpack.c.b16 %v2102, %v2100
        %v2189 = vpack.c.b16 %v2105, %v2103
        %v2190 = vpack.c.b16 %v2106, %v2104
        %v2191 = vpack.c.b16 %v2109, %v2107
        %v2192 = vpack.c.b16 %v2110, %v2108
        %v2193 = vpack.c.b16 %v2113, %v2111
        %v2194 = vpack.c.b16 %v2114, %v2112
        %v2195 = vpack.c.b16 %v2117, %v2115
        %v2196 = vpack.c.b16 %v2118, %v2116
        %v2197 = vpack.c.b16 %v2121, %v2119
        %v2198 = vpack.c.b16 %v2122, %v2120
        %v2199 = vpack.c.b16 %v2125, %v2123
        %v2200 = vpack.c.b16 %v2126, %v2124
        %v2201 = vpack.c.b16 %v2129, %v2127
        %v2202 = vpack.c.b16 %v2130, %v2128
        %v2203 = vpack.c.b16 %v2133, %v2131
        %v2204 = vpack.c.b16 %v2134, %v2132
        %v2205 = vpack.c.b16 %v2137, %v2135
        %v2206 = vpack.c.b16 %v2138, %v2136
        %v2207 = vpack.c.b16 %v2141, %v2139
        %v2208 = vpack.c.b16 %v2142, %v2140
        %v2209 = vpack.c.b16 %v2145, %v2143
        %v2210 = vpack.c.b16 %v2146, %v2144
        %2275 = vmatprep.subr.bf16.mxu0 %v2148
        %2276 = vmatpush1.bf16.msra.mxu0 %v2147
        %2277 = vmatprep.subr.bf16.mxu0 %v2150
        %2278 = vmatpush1.bf16.msra.mxu0 %v2149
        %2279 = vmatprep.subr.bf16.mxu0 %v2152
        %2280 = vmatpush1.bf16.msra.mxu0 %v2151
        %2281 = vmatprep.subr.bf16.mxu0 %v2154
        %2282 = vmatpush1.bf16.msra.mxu0 %v2153
        %2283 = vmatprep.subr.bf16.mxu0 %v2156
        %2284 = vmatpush1.bf16.msra.mxu0 %v2155
        %2285 = vmatprep.subr.bf16.mxu0 %v2158
        %2286 = vmatpush1.bf16.msra.mxu0 %v2157
        %2287 = vmatprep.subr.bf16.mxu0 %v2160
        %2288 = vmatpush1.bf16.msra.mxu0 %v2159
        %2289 = vmatprep.subr.bf16.mxu0 %v2162
        %2290 = vmatpush1.bf16.msra.mxu0 %v2161
        %2291 = vmatprep.subr.bf16.mxu0 %v2164
        %2292 = vmatpush1.bf16.msra.mxu0 %v2163
        %2293 = vmatprep.subr.bf16.mxu0 %v2166
        %2294 = vmatpush1.bf16.msra.mxu0 %v2165
        %2295 = vmatprep.subr.bf16.mxu0 %v2168
        %2296 = vmatpush1.bf16.msra.mxu0 %v2167
        %2297 = vmatprep.subr.bf16.mxu0 %v2170
        %2298 = vmatpush1.bf16.msra.mxu0 %v2169
        %2299 = vmatprep.subr.bf16.mxu0 %v2172
        %2300 = vmatpush1.bf16.msra.mxu0 %v2171
        %2301 = vmatprep.subr.bf16.mxu0 %v2174
        %2302 = vmatpush1.bf16.msra.mxu0 %v2173
        %2303 = vmatprep.subr.bf16.mxu0 %v2176
        %2304 = vmatpush1.bf16.msra.mxu0 %v2175
        %2305 = vmatprep.subr.bf16.mxu0 %v2178
        %2306 = vmatpush1.bf16.msra.mxu0 %v2177
        %2307 = vmatprep.mubr.bf16.mxu0 %v1876
        %2308 = vmatmul.mubr.bf16.gmra.mrb[0].mxu0 %v1875
        %v2309 = vpop.f32.mrb[0].mxu0
        %v2310 = vadd.f32 %v1948, %v2309
        %v2311 = vpop.f32.mrb[0].mxu0
        %v2312 = vadd.f32 %v1952, %v2311
        %v2313 = vpop.f32.mrb[0].mxu0
        %v2314 = vadd.f32 %v1948, %v2313
        %v2315 = vpop.f32.mrb[0].mxu0
        %v2316 = vadd.f32 %v1952, %v2315
        %2317 = vdwg.mxu0
        %2318 = vmatprep.subr.bf16.mxu0 %v2180
        %2319 = vmatpush1.bf16.msra.mxu0 %v2179
        %2320 = vmatprep.subr.bf16.mxu0 %v2182
        %2321 = vmatpush1.bf16.msra.mxu0 %v2181
        %2322 = vmatprep.subr.bf16.mxu0 %v2184
        %2323 = vmatpush1.bf16.msra.mxu0 %v2183
        %2324 = vmatprep.subr.bf16.mxu0 %v2186
        %2325 = vmatpush1.bf16.msra.mxu0 %v2185
        %2326 = vmatprep.subr.bf16.mxu0 %v2188
        %2327 = vmatpush1.bf16.msra.mxu0 %v2187
        %2328 = vmatprep.subr.bf16.mxu0 %v2190
        %2329 = vmatpush1.bf16.msra.mxu0 %v2189
        %2330 = vmatprep.subr.bf16.mxu0 %v2192
        %2331 = vmatpush1.bf16.msra.mxu0 %v2191
        %2332 = vmatprep.subr.bf16.mxu0 %v2194
        %2333 = vmatpush1.bf16.msra.mxu0 %v2193
        %2334 = vmatprep.subr.bf16.mxu0 %v2196
        %2335 = vmatpush1.bf16.msra.mxu0 %v2195
        %2336 = vmatprep.subr.bf16.mxu0 %v2198
        %2337 = vmatpush1.bf16.msra.mxu0 %v2197
        %2338 = vmatprep.subr.bf16.mxu0 %v2200
        %2339 = vmatpush1.bf16.msra.mxu0 %v2199
        %2340 = vmatprep.subr.bf16.mxu0 %v2202
        %2341 = vmatpush1.bf16.msra.mxu0 %v2201
        %2342 = vmatprep.subr.bf16.mxu0 %v2204
        %2343 = vmatpush1.bf16.msra.mxu0 %v2203
        %2344 = vmatprep.subr.bf16.mxu0 %v2206
        %2345 = vmatpush1.bf16.msra.mxu0 %v2205
        %2346 = vmatprep.subr.bf16.mxu0 %v2208
        %2347 = vmatpush1.bf16.msra.mxu0 %v2207
        %2348 = vmatprep.subr.bf16.mxu0 %v2210
        %2349 = vmatpush1.bf16.msra.mxu0 %v2209
        %2350 = vmatprep.mubr.bf16.mxu0 %v1878
        %2351 = vmatmul.mubr.bf16.gmra.mrb[0].mxu0 %v1877
        %v2352 = vpop.f32.mrb[0].mxu0
        %v2353 = vadd.f32 %v2310, %v2352
        %v2354 = vpop.f32.mrb[0].mxu0
        %v2355 = vadd.f32 %v2312, %v2354
        %v2356 = vpop.f32.mrb[0].mxu0
        %v2357 = vadd.f32 %v2314, %v2356
        %v2358 = vpop.f32.mrb[0].mxu0
        %v2359 = vadd.f32 %v2316, %v2358
        %2360 = vdwg.mxu0
        %v2361 = vmax.f32 %v2353, 0.0
        %v2362 = vmax.f32 %v2355, 0.0
        %v2363 = vmax.f32 %v2357, 0.0
        %v2364 = vmax.f32 %v2359, 0.0
        %v2365 = vpack.c.bf16 %v2363, %v2361
        %v2366 = vpack.c.bf16 %v2364, %v2362
        %v2367 = vld [vmem:[#allocation10] sm:$0xff]
        %v2368 = vld [vmem:[#allocation10 + $0x8] sm:$0xff]
        %v2369 = vld [vmem:[#allocation10 + $0x10] sm:$0xff]
        %v2370 = vld [vmem:[#allocation10 + $0x18] sm:$0xff]
        %v2371 = vld [vmem:[#allocation10 + $0x20] sm:$0xff]
        %v2372 = vld [vmem:[#allocation10 + $0x28] sm:$0xff]
        %v2373 = vld [vmem:[#allocation10 + $0x30] sm:$0xff]
        %v2374 = vld [vmem:[#allocation10 + $0x38] sm:$0xff]
        %v2375 = vld [vmem:[#allocation10 + $0x40] sm:$0xff]
        %v2376 = vld [vmem:[#allocation10 + $0x48] sm:$0xff]
        %v2377 = vld [vmem:[#allocation10 + $0x50] sm:$0xff]
        %v2378 = vld [vmem:[#allocation10 + $0x58] sm:$0xff]
        %v2379 = vld [vmem:[#allocation10 + $0x60] sm:$0xff]
        %v2380 = vld [vmem:[#allocation10 + $0x68] sm:$0xff]
        %v2381 = vld [vmem:[#allocation10 + $0x70] sm:$0xff]
        %v2382 = vld [vmem:[#allocation10 + $0x78] sm:$0xff]
        %v2383 = vld [vmem:[#allocation10 + $0x80] sm:$0xff]
        %v2384 = vld [vmem:[#allocation10 + $0x88] sm:$0xff]
        %v2385 = vld [vmem:[#allocation10 + $0x90] sm:$0xff]
        %v2386 = vld [vmem:[#allocation10 + $0x98] sm:$0xff]
        %v2387 = vld [vmem:[#allocation10 + $0xa0] sm:$0xff]
        %v2388 = vld [vmem:[#allocation10 + $0xa8] sm:$0xff]
        %v2389 = vld [vmem:[#allocation10 + $0xb0] sm:$0xff]
        %v2390 = vld [vmem:[#allocation10 + $0xb8] sm:$0xff]
        %v2391 = vld [vmem:[#allocation10 + $0xc0] sm:$0xff]
        %v2392 = vld [vmem:[#allocation10 + $0xc8] sm:$0xff]
        %v2393 = vld [vmem:[#allocation10 + $0xd0] sm:$0xff]
        %v2394 = vld [vmem:[#allocation10 + $0xd8] sm:$0xff]
        %v2395 = vld [vmem:[#allocation10 + $0xe0] sm:$0xff]
        %v2396 = vld [vmem:[#allocation10 + $0xe8] sm:$0xff]
        %v2397 = vld [vmem:[#allocation10 + $0xf0] sm:$0xff]
        %v2398 = vld [vmem:[#allocation10 + $0xf8] sm:$0xff]
        %v2399 = vld [vmem:[%s8] sm:$0x3]
        %v2401 = vlaneseq
        %v2402 = vshrl.u32 %v2401, 7
        %v2403 = vsub.s32 0, %v2402
        %v2404 = vrot.slane %v2399, %v2403
        %v2405 = vlaneseq
        %v2406 = vshrl.u32 %v2405, 7
        %v2407 = vsub.s32 1, %v2406
        %v2408 = vrot.slane %v2399, %v2407
        %v2443 = vunpack.c.l.b16 %v2367
        %v2444 = vunpack.c.h.b16 %v2367
        %v2445 = vunpack.c.l.b16 %v2368
        %v2446 = vunpack.c.h.b16 %v2368
        %v2447 = vunpack.c.l.b16 %v2369
        %v2448 = vunpack.c.h.b16 %v2369
        %v2449 = vunpack.c.l.b16 %v2370
        %v2450 = vunpack.c.h.b16 %v2370
        %v2451 = vunpack.c.l.b16 %v2371
        %v2452 = vunpack.c.h.b16 %v2371
        %v2453 = vunpack.c.l.b16 %v2372
        %v2454 = vunpack.c.h.b16 %v2372
        %v2455 = vunpack.c.l.b16 %v2373
        %v2456 = vunpack.c.h.b16 %v2373
        %v2457 = vunpack.c.l.b16 %v2374
        %v2458 = vunpack.c.h.b16 %v2374
        %v2459 = vunpack.c.l.b16 %v2375
        %v2460 = vunpack.c.h.b16 %v2375
        %v2461 = vunpack.c.l.b16 %v2376
        %v2462 = vunpack.c.h.b16 %v2376
        %v2463 = vunpack.c.l.b16 %v2377
        %v2464 = vunpack.c.h.b16 %v2377
        %v2465 = vunpack.c.l.b16 %v2378
        %v2466 = vunpack.c.h.b16 %v2378
        %v2467 = vunpack.c.l.b16 %v2379
        %v2468 = vunpack.c.h.b16 %v2379
        %v2469 = vunpack.c.l.b16 %v2380
        %v2470 = vunpack.c.h.b16 %v2380
        %v2471 = vunpack.c.l.b16 %v2381
        %v2472 = vunpack.c.h.b16 %v2381
        %v2473 = vunpack.c.l.b16 %v2382
        %v2474 = vunpack.c.h.b16 %v2382
        %v2475 = vunpack.c.l.b16 %v2383
        %v2476 = vunpack.c.h.b16 %v2383
        %v2477 = vunpack.c.l.b16 %v2384
        %v2478 = vunpack.c.h.b16 %v2384
        %v2479 = vunpack.c.l.b16 %v2385
        %v2480 = vunpack.c.h.b16 %v2385
        %v2481 = vunpack.c.l.b16 %v2386
        %v2482 = vunpack.c.h.b16 %v2386
        %v2483 = vunpack.c.l.b16 %v2387
        %v2484 = vunpack.c.h.b16 %v2387
        %v2485 = vunpack.c.l.b16 %v2388
        %v2486 = vunpack.c.h.b16 %v2388
        %v2487 = vunpack.c.l.b16 %v2389
        %v2488 = vunpack.c.h.b16 %v2389
        %v2489 = vunpack.c.l.b16 %v2390
        %v2490 = vunpack.c.h.b16 %v2390
        %v2491 = vunpack.c.l.b16 %v2391
        %v2492 = vunpack.c.h.b16 %v2391
        %v2493 = vunpack.c.l.b16 %v2392
        %v2494 = vunpack.c.h.b16 %v2392
        %v2495 = vunpack.c.l.b16 %v2393
        %v2496 = vunpack.c.h.b16 %v2393
        %v2497 = vunpack.c.l.b16 %v2394
        %v2498 = vunpack.c.h.b16 %v2394
        %v2499 = vunpack.c.l.b16 %v2395
        %v2500 = vunpack.c.h.b16 %v2395
        %v2501 = vunpack.c.l.b16 %v2396
        %v2502 = vunpack.c.h.b16 %v2396
        %v2503 = vunpack.c.l.b16 %v2397
        %v2504 = vunpack.c.h.b16 %v2397
        %v2505 = vunpack.c.l.b16 %v2398
        %v2506 = vunpack.c.h.b16 %v2398
        %v2507 = vpack.c.b16 %v2445, %v2443
        %v2508 = vpack.c.b16 %v2446, %v2444
        %v2509 = vpack.c.b16 %v2449, %v2447
        %v2510 = vpack.c.b16 %v2450, %v2448
        %v2511 = vpack.c.b16 %v2453, %v2451
        %v2512 = vpack.c.b16 %v2454, %v2452
        %v2513 = vpack.c.b16 %v2457, %v2455
        %v2514 = vpack.c.b16 %v2458, %v2456
        %v2515 = vpack.c.b16 %v2461, %v2459
        %v2516 = vpack.c.b16 %v2462, %v2460
        %v2517 = vpack.c.b16 %v2465, %v2463
        %v2518 = vpack.c.b16 %v2466, %v2464
        %v2519 = vpack.c.b16 %v2469, %v2467
        %v2520 = vpack.c.b16 %v2470, %v2468
        %v2521 = vpack.c.b16 %v2473, %v2471
        %v2522 = vpack.c.b16 %v2474, %v2472
        %v2523 = vpack.c.b16 %v2477, %v2475
        %v2524 = vpack.c.b16 %v2478, %v2476
        %v2525 = vpack.c.b16 %v2481, %v2479
        %v2526 = vpack.c.b16 %v2482, %v2480
        %v2527 = vpack.c.b16 %v2485, %v2483
        %v2528 = vpack.c.b16 %v2486, %v2484
        %v2529 = vpack.c.b16 %v2489, %v2487
        %v2530 = vpack.c.b16 %v2490, %v2488
        %v2531 = vpack.c.b16 %v2493, %v2491
        %v2532 = vpack.c.b16 %v2494, %v2492
        %v2533 = vpack.c.b16 %v2497, %v2495
        %v2534 = vpack.c.b16 %v2498, %v2496
        %v2535 = vpack.c.b16 %v2501, %v2499
        %v2536 = vpack.c.b16 %v2502, %v2500
        %v2537 = vpack.c.b16 %v2505, %v2503
        %v2538 = vpack.c.b16 %v2506, %v2504
        %2571 = vmatprep.subr.bf16.mxu0 %v2508
        %2572 = vmatpush1.bf16.msra.mxu0 %v2507
        %2573 = vmatprep.subr.bf16.mxu0 %v2510
        %2574 = vmatpush1.bf16.msra.mxu0 %v2509
        %2575 = vmatprep.subr.bf16.mxu0 %v2512
        %2576 = vmatpush1.bf16.msra.mxu0 %v2511
        %2577 = vmatprep.subr.bf16.mxu0 %v2514
        %2578 = vmatpush1.bf16.msra.mxu0 %v2513
        %2579 = vmatprep.subr.bf16.mxu0 %v2516
        %2580 = vmatpush1.bf16.msra.mxu0 %v2515
        %2581 = vmatprep.subr.bf16.mxu0 %v2518
        %2582 = vmatpush1.bf16.msra.mxu0 %v2517
        %2583 = vmatprep.subr.bf16.mxu0 %v2520
        %2584 = vmatpush1.bf16.msra.mxu0 %v2519
        %2585 = vmatprep.subr.bf16.mxu0 %v2522
        %2586 = vmatpush1.bf16.msra.mxu0 %v2521
        %2587 = vmatprep.subr.bf16.mxu0 %v2524
        %2588 = vmatpush1.bf16.msra.mxu0 %v2523
        %2589 = vmatprep.subr.bf16.mxu0 %v2526
        %2590 = vmatpush1.bf16.msra.mxu0 %v2525
        %2591 = vmatprep.subr.bf16.mxu0 %v2528
        %2592 = vmatpush1.bf16.msra.mxu0 %v2527
        %2593 = vmatprep.subr.bf16.mxu0 %v2530
        %2594 = vmatpush1.bf16.msra.mxu0 %v2529
        %2595 = vmatprep.subr.bf16.mxu0 %v2532
        %2596 = vmatpush1.bf16.msra.mxu0 %v2531
        %2597 = vmatprep.subr.bf16.mxu0 %v2534
        %2598 = vmatpush1.bf16.msra.mxu0 %v2533
        %2599 = vmatprep.subr.bf16.mxu0 %v2536
        %2600 = vmatpush1.bf16.msra.mxu0 %v2535
        %2601 = vmatprep.subr.bf16.mxu0 %v2538
        %2602 = vmatpush1.bf16.msra.mxu0 %v2537
        %2603 = vmatprep.mubr.bf16.mxu0 %v2366
        %2604 = vmatmul.mubr.bf16.gmra.mrb[0].mxu0 %v2365
        %v2605 = vpop.f32.mrb[0].mxu0
        %v2606 = vadd.f32 %v2404, %v2605
        %v2607 = vpop.f32.mrb[0].mxu0
        %v2608 = vadd.f32 %v2408, %v2607
        %v2609 = vpop.f32.mrb[0].mxu0
        %v2610 = vadd.f32 %v2404, %v2609
        %v2611 = vpop.f32.mrb[0].mxu0
        %v2612 = vadd.f32 %v2408, %v2611
        %2613 = vdwg.mxu0
        %v2614 = vmax.f32 %v2606, 0.0
        %v2615 = vmax.f32 %v2608, 0.0
        %v2616 = vmax.f32 %v2610, 0.0
        %v2617 = vmax.f32 %v2612, 0.0
        %v2618 = vpack.c.bf16 %v2616, %v2614
        %v2619 = vpack.c.bf16 %v2617, %v2615
        %v2620 = vld [vmem:[#allocation11] sm:$0xf]
        %v2621 = vld [vmem:[#allocation11 + $0x4] sm:$0xf]
        %v2622 = vld [vmem:[#allocation11 + $0x8] sm:$0xf]
        %v2623 = vld [vmem:[#allocation11 + $0xc] sm:$0xf]
        %v2624 = vld [vmem:[#allocation11 + $0x10] sm:$0xf]
        %v2625 = vld [vmem:[#allocation11 + $0x14] sm:$0xf]
        %v2626 = vld [vmem:[#allocation11 + $0x18] sm:$0xf]
        %v2627 = vld [vmem:[#allocation11 + $0x1c] sm:$0xf]
        %v2628 = vld [vmem:[#allocation11 + $0x20] sm:$0xf]
        %v2629 = vld [vmem:[#allocation11 + $0x24] sm:$0xf]
        %v2630 = vld [vmem:[#allocation11 + $0x28] sm:$0xf]
        %v2631 = vld [vmem:[#allocation11 + $0x2c] sm:$0xf]
        %v2632 = vld [vmem:[#allocation11 + $0x30] sm:$0xf]
        %v2633 = vld [vmem:[#allocation11 + $0x34] sm:$0xf]
        %v2634 = vld [vmem:[#allocation11 + $0x38] sm:$0xf]
        %v2635 = vld [vmem:[#allocation11 + $0x3c] sm:$0xf]
        %v2636 = vld [vmem:[#allocation11 + $0x40] sm:$0xf]
        %v2637 = vld [vmem:[#allocation11 + $0x44] sm:$0xf]
        %v2638 = vld [vmem:[#allocation11 + $0x48] sm:$0xf]
        %v2639 = vld [vmem:[#allocation11 + $0x4c] sm:$0xf]
        %v2640 = vld [vmem:[#allocation11 + $0x50] sm:$0xf]
        %v2641 = vld [vmem:[#allocation11 + $0x54] sm:$0xf]
        %v2642 = vld [vmem:[#allocation11 + $0x58] sm:$0xf]
        %v2643 = vld [vmem:[#allocation11 + $0x5c] sm:$0xf]
        %v2644 = vld [vmem:[#allocation11 + $0x60] sm:$0xf]
        %v2645 = vld [vmem:[#allocation11 + $0x64] sm:$0xf]
        %v2646 = vld [vmem:[#allocation11 + $0x68] sm:$0xf]
        %v2647 = vld [vmem:[#allocation11 + $0x6c] sm:$0xf]
        %v2648 = vld [vmem:[#allocation11 + $0x70] sm:$0xf]
        %v2649 = vld [vmem:[#allocation11 + $0x74] sm:$0xf]
        %v2650 = vld [vmem:[#allocation11 + $0x78] sm:$0xf]
        %v2651 = vld [vmem:[#allocation11 + $0x7c] sm:$0xf]
        %v2652 = vld [vmem:[%s10] sm:$0x1]
        %v2654 = vlaneseq
        %v2655 = vshrl.u32 %v2654, 7
        %v2656 = vsub.s32 0, %v2655
        %v2657 = vrot.slane %v2652, %v2656
        %v2691 = vunpack.c.l.b16 %v2620
        %v2692 = vunpack.c.l.b16 %v2621
        %v2693 = vunpack.c.l.b16 %v2622
        %v2694 = vunpack.c.l.b16 %v2623
        %v2695 = vunpack.c.l.b16 %v2624
        %v2696 = vunpack.c.l.b16 %v2625
        %v2697 = vunpack.c.l.b16 %v2626
        %v2698 = vunpack.c.l.b16 %v2627
        %v2699 = vunpack.c.l.b16 %v2628
        %v2700 = vunpack.c.l.b16 %v2629
        %v2701 = vunpack.c.l.b16 %v2630
        %v2702 = vunpack.c.l.b16 %v2631
        %v2703 = vunpack.c.l.b16 %v2632
        %v2704 = vunpack.c.l.b16 %v2633
        %v2705 = vunpack.c.l.b16 %v2634
        %v2706 = vunpack.c.l.b16 %v2635
        %v2707 = vunpack.c.l.b16 %v2636
        %v2708 = vunpack.c.l.b16 %v2637
        %v2709 = vunpack.c.l.b16 %v2638
        %v2710 = vunpack.c.l.b16 %v2639
        %v2711 = vunpack.c.l.b16 %v2640
        %v2712 = vunpack.c.l.b16 %v2641
        %v2713 = vunpack.c.l.b16 %v2642
        %v2714 = vunpack.c.l.b16 %v2643
        %v2715 = vunpack.c.l.b16 %v2644
        %v2716 = vunpack.c.l.b16 %v2645
        %v2717 = vunpack.c.l.b16 %v2646
        %v2718 = vunpack.c.l.b16 %v2647
        %v2719 = vunpack.c.l.b16 %v2648
        %v2720 = vunpack.c.l.b16 %v2649
        %v2721 = vunpack.c.l.b16 %v2650
        %v2722 = vunpack.c.l.b16 %v2651
        %v2723 = vpack.c.b16 %v2692, %v2691
        %v2724 = vpack.c.b16 %v2694, %v2693
        %v2725 = vpack.c.b16 %v2696, %v2695
        %v2726 = vpack.c.b16 %v2698, %v2697
        %v2727 = vpack.c.b16 %v2700, %v2699
        %v2728 = vpack.c.b16 %v2702, %v2701
        %v2729 = vpack.c.b16 %v2704, %v2703
        %v2730 = vpack.c.b16 %v2706, %v2705
        %v2731 = vpack.c.b16 %v2708, %v2707
        %v2732 = vpack.c.b16 %v2710, %v2709
        %v2733 = vpack.c.b16 %v2712, %v2711
        %v2734 = vpack.c.b16 %v2714, %v2713
        %v2735 = vpack.c.b16 %v2716, %v2715
        %v2736 = vpack.c.b16 %v2718, %v2717
        %v2737 = vpack.c.b16 %v2720, %v2719
        %v2738 = vpack.c.b16 %v2722, %v2721
        %2755 = vmatprep.subr.bf16.mxu0 0
        %2756 = vmatpush1.bf16.msra.mxu0 %v2723
        %2757 = vmatprep.subr.bf16.mxu0 0
        %2758 = vmatpush1.bf16.msra.mxu0 %v2724
        %2759 = vmatprep.subr.bf16.mxu0 0
        %2760 = vmatpush1.bf16.msra.mxu0 %v2725
        %2761 = vmatprep.subr.bf16.mxu0 0
        %2762 = vmatpush1.bf16.msra.mxu0 %v2726
        %2763 = vmatprep.subr.bf16.mxu0 0
        %2764 = vmatpush1.bf16.msra.mxu0 %v2727
        %2765 = vmatprep.subr.bf16.mxu0 0
        %2766 = vmatpush1.bf16.msra.mxu0 %v2728
        %2767 = vmatprep.subr.bf16.mxu0 0
        %2768 = vmatpush1.bf16.msra.mxu0 %v2729
        %2769 = vmatprep.subr.bf16.mxu0 0
        %2770 = vmatpush1.bf16.msra.mxu0 %v2730
        %2771 = vmatprep.subr.bf16.mxu0 0
        %2772 = vmatpush1.bf16.msra.mxu0 %v2731
        %2773 = vmatprep.subr.bf16.mxu0 0
        %2774 = vmatpush1.bf16.msra.mxu0 %v2732
        %2775 = vmatprep.subr.bf16.mxu0 0
        %2776 = vmatpush1.bf16.msra.mxu0 %v2733
        %2777 = vmatprep.subr.bf16.mxu0 0
        %2778 = vmatpush1.bf16.msra.mxu0 %v2734
        %2779 = vmatprep.subr.bf16.mxu0 0
        %2780 = vmatpush1.bf16.msra.mxu0 %v2735
        %2781 = vmatprep.subr.bf16.mxu0 0
        %2782 = vmatpush1.bf16.msra.mxu0 %v2736
        %2783 = vmatprep.subr.bf16.mxu0 0
        %2784 = vmatpush1.bf16.msra.mxu0 %v2737
        %2785 = vmatprep.subr.bf16.mxu0 0
        %2786 = vmatpush1.bf16.msra.mxu0 %v2738
        %2787 = vmatprep.mubr.bf16.mxu0 %v2619
        %2788 = vmatmul.mubr.bf16.gmra.mrb[0].mxu0 %v2618
        %v2789 = vpop.f32.mrb[0].mxu0
        %v2790 = vadd.f32 %v2657, %v2789
        %v2791 = vpop.f32.mrb[0].mxu0
        %v2792 = vpop.f32.mrb[0].mxu0
        %v2793 = vadd.f32 %v2657, %v2792
        %v2794 = vpop.f32.mrb[0].mxu0
        %2795 = vdwg.mxu0
        %2796 = vst [vmem:[%s478] sm:$0xff] %v2790
        %2797 = vst [vmem:[%s478 + $0x8] sm:$0xff] %v2793
        %s2798 = sand.u32 %s275, 1
        %s2799 = scalar_lea.sflag [#allocation4], %s2798
        %s2800 = sand.u32 %s275, 1
        %s2801 = smul.addr %s2800, 16
        %s2802 = scalar_lea.vmem [#allocation13], %s2801
        // Predicated region
        $region89: #{tpu_custom_call.1} parent=63 // pred_check
          %p2803 = pneg %p285
        $region90: #{tpu_custom_call.1} parent=63 // pred_check_branch
          %2805 = sbr.rel (%p2803) target = $region92
        $region91: #{tpu_custom_call.1} parent=63 // pred_region
          %s2806 = smul.u32 2, %s31
          %s2808 = ssub.s32 256, 256
          %2809 = vsyncadd %s2799, %s2808
          %s2810 = smul.addr %s2806, 128
          %s2811 = scalar_lea.hbm %s11, %s2810
          %s2812 = sshll.u32 %s2802, 4
          %s2813 = int_to_ptr.vmem [resolvable:$true] %s2812
          %2818 = dma.vmem_to_hbm [thread:$0]  %s2813, 256, %s2811, %s2799, 128, 128, 8
        $region92: #{tpu_custom_call.1} parent=63 // pred_fallthru
          _
      $region64: #{tpu_custom_call.1} parent=5 // pred_fallthru
        _
      %p2819 = scmp.le.s32.totalorder 2, %s26
      // Predicated region
      $region93: #{tpu_custom_call.1} parent=5 // pred_check
        %p2820 = pneg %p2819
      $region94: #{tpu_custom_call.1} parent=5 // pred_check_branch
        %2822 = sbr.rel (%p2820) target = $region96
      $region95: #{tpu_custom_call.1} parent=5 // pred_region
        %s2823 = ssub.s32 %s26, 2
        // Predicated region
        $region97: #{tpu_custom_call.1} parent=95 // pred_check
          %p2824 = pneg %p291
        $region98: #{tpu_custom_call.1} parent=95 // pred_check_branch
          %2826 = sbr.rel (%p2824) target = $region100
        $region99: #{tpu_custom_call.1} parent=95 // pred_region
          %s2827 = sand.u32 %s276, 1
          %s2828 = scalar_lea.sflag [#allocation4], %s2827
          %s2829 = sand.u32 %s276, 1
          %s2830 = smul.addr %s2829, 16
          %s2831 = scalar_lea.vmem [#allocation13], %s2830
          %2832 = dma.done %s2828, 256
        $region100: #{tpu_custom_call.1} parent=95 // pred_fallthru
          _
      $region96: #{tpu_custom_call.1} parent=5 // pred_fallthru
        _
    $region6: #{tpu_custom_call.1} parent=1 // loop_footer
      %s30 = sadd.s32 1, %s26
    $region7: #{tpu_custom_call.1} parent=1 // loop_footer_branch
      %25 = sbr.rel target = $region3
    $region8: #{tpu_custom_call.1} parent=1 // loop_exit
      _
    %2833 = vsyncpa [#allocation3], 1
    %s2834 = scalar_lea.sflag [#allocation3], 1
    %2835 = vsyncpa %s2834, 1
    %2836 = vsyncpa [#allocation6], 1
    %2837 = vsyncpa [#allocation9], 1
    %2838 = vsyncpa [#allocation12], 1
    %2839 = vsyncpa [#allocation4], 1
    %s2840 = scalar_lea.sflag [#allocation4], 1
    %2841 = vsyncpa %s2840, 1

</llo_original>
